<compile_context>
chip_gen: v7x
topology: tpu7x:2x2x1
jax: 0.10.0
libtpu: 0.0.40
codegen_flags: <defaults>
</compile_context>

<pallas_src>
import functools

import jax
import jax.numpy as jnp
from jax.experimental import pallas as pl
from jax.experimental.pallas import tpu as pltpu

EPS = 1e-5
LANE = 128
SUBLANE = 8


def _round_up(x, m):
    return (x + m - 1) // m * m


def _vmem_capacity_bytes():
    try:
        cap = getattr(pltpu.get_tpu_info(), "vmem_capacity_bytes", None)
        if cap:
            return int(cap)
    except Exception:
        pass
    return 64 * 1024 * 1024  # conservative (v7x per-TensorCore)


def _mlp_kernel(x_ref, w1_ref, gamma_ref, beta_ref, w2_ref, b2_ref,
                o_ref, h_stash_ref, sum_ref, sumsq_ref, scale_ref, shift_ref,
                *, n_rows, tile_n, stash):
    phase = pl.program_id(0)   # 0 = accumulate BN stats, 1 = normalize+project
    tile = pl.program_id(1)    # row-tile index

    def matmul1():
        # (tile_n, D) @ (D, Hp): bf16 operands, f32 accumulation on the MXU.
        # W1 is already bf16-resident; only the x tile is cast here (cheap,
        # tile-sized) so no padded/cast copy of x is ever materialized in HBM.
        return jnp.dot(x_ref[...].astype(jnp.bfloat16), w1_ref[...],
                       preferred_element_type=jnp.float32)

    @pl.when(phase == 0)
    def _stats_phase():
        @pl.when(tile == 0)
        def _init():
            sum_ref[...] = jnp.zeros_like(sum_ref)
            sumsq_ref[...] = jnp.zeros_like(sumsq_ref)

        h = matmul1()
        if stash:
            start = pl.multiple_of(tile * tile_n, tile_n)
            h_stash_ref[pl.ds(start, tile_n), :] = h.astype(h_stash_ref.dtype)
        if n_rows % tile_n != 0:
            # Mask rows past the end of the batch (partial last tile) so they
            # do not bias the batch statistics.
            rows = jax.lax.broadcasted_iota(jnp.int32, h.shape, 0)
            h = jnp.where(rows < (n_rows - tile * tile_n), h, 0.0)
        sum_ref[...] += jnp.sum(h, axis=0, keepdims=True)
        sumsq_ref[...] += jnp.sum(h * h, axis=0, keepdims=True)
        # NOTE: o_ref is intentionally NOT written here.  Its index_map parks
        # all phase-0 steps on output block 0, so nothing is flushed to HBM.

    @pl.when(phase == 1)
    def _apply_phase():
        @pl.when(tile == 0)
        def _finalize_stats():
            inv_n = jnp.float32(1.0 / n_rows)
            mean = sum_ref[...] * inv_n
            # Biased (train-mode) variance; clamp the slight negatives the
            # E[h^2]-E[h]^2 form can produce from cancellation.
            var = jnp.maximum(sumsq_ref[...] * inv_n - mean * mean, 0.0)
            scale = gamma_ref[...] * jax.lax.rsqrt(var + EPS)
            scale_ref[...] = scale
            # The Linear bias b1 shifts h and the batch mean identically, so
            # it cancels out of train-mode BatchNorm and is dropped entirely.
            shift_ref[...] = beta_ref[...] - mean * scale

        if stash:
            start = pl.multiple_of(tile * tile_n, tile_n)
            h = h_stash_ref[pl.ds(start, tile_n), :].astype(jnp.float32)
        else:
            h = matmul1()   # fallback when the h stash would not fit VMEM
        # Fused BN epilogue + ReLU: a single scale/shift VPU pass.
        a = jnp.maximum(h * scale_ref[...] + shift_ref[...], 0.0)
        out = jnp.dot(a.astype(jnp.bfloat16), w2_ref[...],
                      preferred_element_type=jnp.float32)
        o_ref[...] = (out + b2_ref[...]).astype(o_ref.dtype)


def mlp_forward(x, w1, b1, gamma, beta, w2, b2, *, tile_n=None, stash=None):
    """x:(N,D) w1:(D,H) b1:(H,) gamma/beta:(H,) w2:(H,P) b2:(P,) -> (N,P)."""
    n, d = x.shape
    d2, hidden = w1.shape
    h2, proj = w2.shape
    assert d == d2 and hidden == h2
    del b1  # cancels exactly under train-mode BatchNorm (see kernel comment)

    vmem_cap = _vmem_capacity_bytes()
    budget = int(0.70 * vmem_cap)

    # Generation-aware row tile: bigger on 128 MiB-VMEM chips (v5e/v6e).
    if tile_n is None:
        tile_n = 512 if vmem_cap >= (100 << 20) else 256
    tile_n = _round_up(max(int(tile_n), SUBLANE), SUBLANE)
    tile_n = min(tile_n, _round_up(n, SUBLANE))
    nt = pl.cdiv(n, tile_n)
    n_pad = nt * tile_n

    # Only weight/param feature dims are zero-padded to 128-lane slabs (done
    # once, cheap).  x keeps its native shape; the batch axis is handled with
    # partial last blocks + masking, so no padded HBM copy of x is created.
    h_p = _round_up(hidden, LANE)
    p_p = _round_up(proj, LANE)

    f32, bf16 = jnp.float32, jnp.bfloat16
    w1p = jnp.pad(w1, ((0, 0), (0, h_p - hidden))).astype(bf16)
    gp = jnp.pad(gamma.reshape(1, -1).astype(f32), ((0, 0), (0, h_p - hidden)))
    bp = jnp.pad(beta.reshape(1, -1).astype(f32), ((0, 0), (0, h_p - hidden)))
    w2p = jnp.pad(w2, ((0, h_p - hidden), (0, p_p - proj))).astype(bf16)
    b2p = jnp.pad(b2.reshape(1, -1).astype(f32), ((0, 0), (0, p_p - proj)))

    # Rough VMEM accounting (bytes): double-buffered x/out tiles, resident
    # bf16 weights (count 2 copies to stay safe if Buffered(1) is rejected),
    # BN scratch, plus generous in-kernel temporaries.
    weight_bytes = 2 * (d * h_p + h_p * p_p)            # bf16 weights (1 copy)
    vec_bytes = 4 * (2 * h_p + p_p)                     # gamma, beta, b2
    tile_bytes = 2 * tile_n * d * 4 + 2 * tile_n * p_p * 4
    temp_bytes = 4 * tile_n * h_p * 4
    stat_bytes = 4 * 4 * h_p
    base = 2 * weight_bytes + 2 * vec_bytes + tile_bytes + temp_bytes + stat_bytes

    # Decide how (whether) to keep h between the two phases.
    if stash is None:
        if base + n_pad * h_p * 4 <= budget:
            stash_dtype, stash_isz = f32, 4      # bit-exact h across phases
        elif base + n_pad * h_p * 2 <= budget:
            stash_dtype, stash_isz = bf16, 2     # halve the stash, still no recompute
        else:
            stash_dtype, stash_isz = None, 0     # recompute matmul1 in phase 1
    elif stash:
        if base + n_pad * h_p * 4 <= budget:
            stash_dtype, stash_isz = f32, 4
        else:
            stash_dtype, stash_isz = bf16, 2
    else:
        stash_dtype, stash_isz = None, 0
    use_stash = stash_dtype is not None

    est = base + (n_pad * h_p * stash_isz if use_stash else SUBLANE * LANE * 4)
    vmem_limit = int(min(budget, max(est + (8 << 20), 32 << 20)))

    mm1_passes = 1 if use_stash else 2
    cost = pl.CostEstimate(
        flops=int(2 * n_pad * h_p * (mm1_passes * d + p_p)),
        transcendentals=int(h_p),
        bytes_accessed=int(mm1_passes * n * d * 4 + n * p_p * 4
                           + weight_bytes + vec_bytes),
    )

    if use_stash:
        # Phase 1 reads h from the VMEM stash, so park the x window on block 0
        # during phase 1 (no second pass of x DMAs from HBM).
        x_index = lambda ph, i: (i * (1 - ph), 0)
    else:
        x_index = lambda ph, i: (i, 0)
    x_spec = pl.BlockSpec((tile_n, d), x_index)
    # Output parks on block 0 during phase 0 (never written, never flushed),
    # then walks the row tiles in phase 1.
    out_spec = pl.BlockSpec((tile_n, p_p), lambda ph, i: (i * ph, 0))

    stash_shape = (n_pad, h_p) if use_stash else (SUBLANE, LANE)
    scratch = [pltpu.VMEM(stash_shape, stash_dtype if use_stash else f32),
               pltpu.VMEM((1, h_p), f32),   # sum
               pltpu.VMEM((1, h_p), f32),   # sumsq
               pltpu.VMEM((1, h_p), f32),   # scale
               pltpu.VMEM((1, h_p), f32)]   # shift

    def run(single_buffer_residents):
        def resident(shape):
            if single_buffer_residents:
                # Constant index_map => keep ONE resident copy in VMEM instead
                # of the default double buffer.
                return pl.BlockSpec(shape, lambda ph, i: (0,) * len(shape),
                                    pipeline_mode=pl.Buffered(1))
            return pl.BlockSpec(shape, lambda ph, i: (0,) * len(shape))

        return pl.pallas_call(
            functools.partial(_mlp_kernel, n_rows=n, tile_n=tile_n,
                              stash=use_stash),
            out_shape=jax.ShapeDtypeStruct((n, p_p), jnp.float32),
            grid_spec=pltpu.PrefetchScalarGridSpec(
                num_scalar_prefetch=0,
                grid=(2, nt),                    # (phase, row tile); phase outer
                in_specs=[x_spec,
                          resident((d, h_p)),    # W1 (bf16)
                          resident((1, h_p)),    # gamma
                          resident((1, h_p)),    # beta
                          resident((h_p, p_p)),  # W2 (bf16)
                          resident((1, p_p))],   # b2
                out_specs=out_spec,
                scratch_shapes=scratch,
            ),
            compiler_params=pltpu.CompilerParams(
                # TODO(synk): split the row-tile axis over both TensorCores on
                # v7x (needs a cross-core sum/sumsq reduction); sequential here.
                dimension_semantics=("arbitrary", "arbitrary"),
                vmem_limit_bytes=vmem_limit,
            ),
            cost_estimate=cost,
        )(x, w1p, gp, bp, w2p, b2p)

    try:
        out = run(True)
    except Exception:
        # pl.Buffered(1) on resident params is a pure VMEM optimization; fall
        # back to default double buffering if this JAX/Mosaic rejects it.
        out = run(False)

    return out[:, :proj]


def reference_forward(x, w1, b1, gamma, beta, w2, b2, *, emulate_bf16=True):
    cast = (lambda a: a.astype(jnp.bfloat16)) if emulate_bf16 else (lambda a: a)
    h = jnp.dot(cast(x), cast(w1), preferred_element_type=jnp.float32) + b1
    mean = jnp.mean(h, axis=0, keepdims=True)
    var = jnp.mean((h - mean) ** 2, axis=0, keepdims=True)
    h = (h - mean) * jax.lax.rsqrt(var + EPS)
    h = jnp.maximum(h * gamma + beta, 0.0)
    return jnp.dot(cast(h), cast(w2), preferred_element_type=jnp.float32) + b2


if __name__ == "__main__":
    # Small shapes consistent with MLP(dim, hidden_dim, projection_dim)
    N, DIM, HIDDEN, PROJ = 8, 32, 64, 32

    key = jax.random.PRNGKey(0)
    kx, kw1, kb1, kw2, kb2, kx2 = jax.random.split(key, 6)

    x = jax.random.normal(kx, (N, DIM), dtype=jnp.float32)
    w1 = jax.random.normal(kw1, (DIM, HIDDEN), dtype=jnp.float32) * 0.1
    b1 = jax.random.normal(kb1, (HIDDEN,), dtype=jnp.float32) * 0.1
    gamma = jnp.ones((HIDDEN,), dtype=jnp.float32)    # BatchNorm1d weight
    beta = jnp.zeros((HIDDEN,), dtype=jnp.float32)    # BatchNorm1d bias
    w2 = jax.random.normal(kw2, (HIDDEN, PROJ), dtype=jnp.float32) * 0.1
    b2 = jax.random.normal(kb2, (PROJ,), dtype=jnp.float32) * 0.1

    # --- single-tile path (auto tile / stash selection) ---
    out = mlp_forward(x, w1, b1, gamma, beta, w2, b2)
    jax.block_until_ready(out)
    assert out.shape == (N, PROJ)
    ref_bf16 = reference_forward(x, w1, b1, gamma, beta, w2, b2, emulate_bf16=True)
    ref_f32 = reference_forward(x, w1, b1, gamma, beta, w2, b2, emulate_bf16=False)
    assert jnp.allclose(out, ref_bf16, atol=1e-2, rtol=1e-2)
    assert jnp.allclose(out, ref_f32, atol=5e-2, rtol=5e-2)

    # --- multi-tile path (two-phase BN stats, partial last tile, h stash) ---
    N2 = 20  # not a multiple of the row tile
    x2 = jax.random.normal(kx2, (N2, DIM), dtype=jnp.float32)
    out2 = mlp_forward(x2, w1, b1, gamma, beta, w2, b2, tile_n=8)
    jax.block_until_ready(out2)
    assert out2.shape == (N2, PROJ)
    ref2_bf16 = reference_forward(x2, w1, b1, gamma, beta, w2, b2, emulate_bf16=True)
    ref2_f32 = reference_forward(x2, w1, b1, gamma, beta, w2, b2, emulate_bf16=False)
    assert jnp.allclose(out2, ref2_bf16, atol=1e-2, rtol=1e-2)
    assert jnp.allclose(out2, ref2_f32, atol=5e-2, rtol=5e-2)

    # --- recompute fallback path (large-N*H regime where the stash won't fit) ---
    out3 = mlp_forward(x2, w1, b1, gamma, beta, w2, b2, tile_n=8, stash=False)
    jax.block_until_ready(out3)
    assert jnp.allclose(out3, ref2_bf16, atol=1e-2, rtol=1e-2)

    print("KERNEL_OK")
</pallas_src>

<mosaic_0001>
module attributes {stable_mosaic.version = 11 : i64} {
  func.func @_mlp_kernel(%arg0: i32, %arg1: i32, %arg2: memref<8x32xf32, #tpu.memory_space<vmem>>, %arg3: memref<32x128xbf16, #tpu.memory_space<vmem>>, %arg4: memref<1x128xf32, #tpu.memory_space<vmem>>, %arg5: memref<1x128xf32, #tpu.memory_space<vmem>>, %arg6: memref<128x128xbf16, #tpu.memory_space<vmem>>, %arg7: memref<1x128xf32, #tpu.memory_space<vmem>>, %arg8: memref<8x128xf32, #tpu.memory_space<vmem>>, %arg9: memref<8x128xf32, #tpu.memory_space<vmem>>, %arg10: memref<1x128xf32, #tpu.memory_space<vmem>>, %arg11: memref<1x128xf32, #tpu.memory_space<vmem>>, %arg12: memref<1x128xf32, #tpu.memory_space<vmem>>, %arg13: memref<1x128xf32, #tpu.memory_space<vmem>>) attributes {dimension_semantics = [#tpu.dimension_semantics<arbitrary>, #tpu.dimension_semantics<arbitrary>], iteration_bounds = array<i64: 2, 1>, scalar_prefetch = 0 : i64, scratch_operands = 5 : i64, tpu.core_type = #tpu.core_type<tc>, window_params = [{transform_indices = @transform_0, window_bounds = array<i64: 8, 32>}, {pipeline_mode = #tpu.pipeline_mode<synchronous>, transform_indices = @transform_1, window_bounds = array<i64: 32, 128>}, {pipeline_mode = #tpu.pipeline_mode<synchronous>, transform_indices = @transform_2, window_bounds = array<i64: 1, 128>}, {pipeline_mode = #tpu.pipeline_mode<synchronous>, transform_indices = @transform_3, window_bounds = array<i64: 1, 128>}, {pipeline_mode = #tpu.pipeline_mode<synchronous>, transform_indices = @transform_4, window_bounds = array<i64: 128, 128>}, {pipeline_mode = #tpu.pipeline_mode<synchronous>, transform_indices = @transform_5, window_bounds = array<i64: 1, 128>}, {transform_indices = @transform_6, window_bounds = array<i64: 8, 128>}]} {
    %c0_i32 = arith.constant 0 : i32
    %0 = arith.cmpi eq, %arg0, %c0_i32 : i32
    %1 = arith.extui %0 : i1 to i32
    %c0_i32_0 = arith.constant 0 : i32
    %2 = arith.cmpi ne, %1, %c0_i32_0 : i32
    scf.if %2 {
      %c0_i32_2 = arith.constant 0 : i32
      %6 = arith.cmpi eq, %arg1, %c0_i32_2 : i32
      %7 = arith.extui %6 : i1 to i32
      %c0_i32_3 = arith.constant 0 : i32
      %8 = arith.cmpi ne, %7, %c0_i32_3 : i32
      scf.if %8 {
        %cst_18 = arith.constant 0.000000e+00 : f32
        %28 = vector.broadcast %cst_18 : f32 to vector<1x128xf32>
        %c0_19 = arith.constant 0 : index
        %c0_20 = arith.constant 0 : index
        %29 = vector.load %arg10[%c0_19, %c0_20] : memref<1x128xf32, #tpu.memory_space<vmem>>, vector<1x128xf32>
        tpu.vector_store %arg10[%c0_19, %c0_20], %28 {strides = array<i32>} : memref<1x128xf32, #tpu.memory_space<vmem>>, vector<1x128xf32>,
        %cst_21 = arith.constant 0.000000e+00 : f32
        %30 = vector.broadcast %cst_21 : f32 to vector<1x128xf32>
        %c0_22 = arith.constant 0 : index
        %c0_23 = arith.constant 0 : index
        %31 = vector.load %arg11[%c0_22, %c0_23] : memref<1x128xf32, #tpu.memory_space<vmem>>, vector<1x128xf32>
        tpu.vector_store %arg11[%c0_22, %c0_23], %30 {strides = array<i32>} : memref<1x128xf32, #tpu.memory_space<vmem>>, vector<1x128xf32>,
      } else {
      }
      %c0 = arith.constant 0 : index
      %c0_4 = arith.constant 0 : index
      %9 = vector.load %arg2[%c0, %c0_4] : memref<8x32xf32, #tpu.memory_space<vmem>>, vector<8x32xf32>
      %10 = arith.truncf %9 : vector<8x32xf32> to vector<8x32xbf16>
      %c0_5 = arith.constant 0 : index
      %c0_6 = arith.constant 0 : index
      %11 = vector.load %arg3[%c0_5, %c0_6] : memref<32x128xbf16, #tpu.memory_space<vmem>>, vector<32x128xbf16>
      %cst = arith.constant dense<0.000000e+00> : vector<8x128xf32>
      %12 = tpu.matmul %10, %11, %cst {dimension_numbers = #tpu.dot_dimension_numbers<[1], [0], [0], [1], [0, 0, 1, 1], [], []>} : vector<8x32xbf16>, vector<32x128xbf16>, vector<8x128xf32> -> vector<8x128xf32>
      %c8_i32 = arith.constant 8 : i32
      %13 = arith.muli %arg1, %c8_i32 : i32
      %14 = tpu.assume_multiple %13, 8 : i32
      %15 = arith.index_cast %14 : i32 to index
      %c0_7 = arith.constant 0 : index
      %16 = vector.load %arg9[%15, %c0_7] : memref<8x128xf32, #tpu.memory_space<vmem>>, vector<8x128xf32>
      tpu.vector_store %arg9[%15, %c0_7], %12 {strides = array<i32>} : memref<8x128xf32, #tpu.memory_space<vmem>>, vector<8x128xf32>,
      %c0_8 = arith.constant 0 : index
      %c0_9 = arith.constant 0 : index
      %17 = vector.load %arg10[%c0_8, %c0_9] : memref<1x128xf32, #tpu.memory_space<vmem>>, vector<1x128xf32>
      %cst_10 = arith.constant dense<0.000000e+00> : vector<128xf32>
      %18 = vector.multi_reduction <add>, %12, %cst_10 [0] : vector<8x128xf32> to vector<128xf32>
      %19 = vector.shape_cast %18 : vector<128xf32> to vector<1x128xf32>
      %20 = arith.addf %17, %19 : vector<1x128xf32>
      %c0_11 = arith.constant 0 : index
      %c0_12 = arith.constant 0 : index
      %21 = vector.load %arg10[%c0_11, %c0_12] : memref<1x128xf32, #tpu.memory_space<vmem>>, vector<1x128xf32>
      tpu.vector_store %arg10[%c0_11, %c0_12], %20 {strides = array<i32>} : memref<1x128xf32, #tpu.memory_space<vmem>>, vector<1x128xf32>,
      %c0_13 = arith.constant 0 : index
      %c0_14 = arith.constant 0 : index
      %22 = vector.load %arg11[%c0_13, %c0_14] : memref<1x128xf32, #tpu.memory_space<vmem>>, vector<1x128xf32>
      %23 = arith.mulf %12, %12 : vector<8x128xf32>
      %cst_15 = arith.constant dense<0.000000e+00> : vector<128xf32>
      %24 = vector.multi_reduction <add>, %23, %cst_15 [0] : vector<8x128xf32> to vector<128xf32>
      %25 = vector.shape_cast %24 : vector<128xf32> to vector<1x128xf32>
      %26 = arith.addf %22, %25 : vector<1x128xf32>
      %c0_16 = arith.constant 0 : index
      %c0_17 = arith.constant 0 : index
      %27 = vector.load %arg11[%c0_16, %c0_17] : memref<1x128xf32, #tpu.memory_space<vmem>>, vector<1x128xf32>
      tpu.vector_store %arg11[%c0_16, %c0_17], %26 {strides = array<i32>} : memref<1x128xf32, #tpu.memory_space<vmem>>, vector<1x128xf32>,
    } else {
    }
    %c1_i32 = arith.constant 1 : i32
    %3 = arith.cmpi eq, %arg0, %c1_i32 : i32
    %4 = arith.extui %3 : i1 to i32
    %c0_i32_1 = arith.constant 0 : i32
    %5 = arith.cmpi ne, %4, %c0_i32_1 : i32
    scf.if %5 {
      %c0_i32_2 = arith.constant 0 : i32
      %6 = arith.cmpi eq, %arg1, %c0_i32_2 : i32
      %7 = arith.extui %6 : i1 to i32
      %c0_i32_3 = arith.constant 0 : i32
      %8 = arith.cmpi ne, %7, %c0_i32_3 : i32
      scf.if %8 {
        %c0_15 = arith.constant 0 : index
        %c0_16 = arith.constant 0 : index
        %28 = vector.load %arg10[%c0_15, %c0_16] : memref<1x128xf32, #tpu.memory_space<vmem>>, vector<1x128xf32>
        %cst_17 = arith.constant 1.250000e-01 : f32
        %29 = vector.broadcast %cst_17 : f32 to vector<1x128xf32>
        %30 = arith.mulf %28, %29 : vector<1x128xf32>
        %c0_18 = arith.constant 0 : index
        %c0_19 = arith.constant 0 : index
        %31 = vector.load %arg11[%c0_18, %c0_19] : memref<1x128xf32, #tpu.memory_space<vmem>>, vector<1x128xf32>
        %cst_20 = arith.constant 1.250000e-01 : f32
        %32 = vector.broadcast %cst_20 : f32 to vector<1x128xf32>
        %33 = arith.mulf %31, %32 : vector<1x128xf32>
        %34 = arith.mulf %30, %30 : vector<1x128xf32>
        %35 = arith.subf %33, %34 : vector<1x128xf32>
        %cst_21 = arith.constant 0.000000e+00 : f32
        %36 = vector.broadcast %cst_21 : f32 to vector<1x128xf32>
        %37 = arith.maximumf %35, %36 : vector<1x128xf32>
        %c0_22 = arith.constant 0 : index
        %c0_23 = arith.constant 0 : index
        %38 = vector.load %arg4[%c0_22, %c0_23] : memref<1x128xf32, #tpu.memory_space<vmem>>, vector<1x128xf32>
        %cst_24 = arith.constant 9.99999974E-6 : f32
        %39 = vector.broadcast %cst_24 : f32 to vector<1x128xf32>
        %40 = arith.addf %37, %39 : vector<1x128xf32>
        %41 = math.rsqrt %40 : vector<1x128xf32>
        %42 = arith.mulf %38, %41 : vector<1x128xf32>
        %c0_25 = arith.constant 0 : index
        %c0_26 = arith.constant 0 : index
        %43 = vector.load %arg12[%c0_25, %c0_26] : memref<1x128xf32, #tpu.memory_space<vmem>>, vector<1x128xf32>
        tpu.vector_store %arg12[%c0_25, %c0_26], %42 {strides = array<i32>} : memref<1x128xf32, #tpu.memory_space<vmem>>, vector<1x128xf32>,
        %c0_27 = arith.constant 0 : index
        %c0_28 = arith.constant 0 : index
        %44 = vector.load %arg5[%c0_27, %c0_28] : memref<1x128xf32, #tpu.memory_space<vmem>>, vector<1x128xf32>
        %45 = arith.mulf %30, %42 : vector<1x128xf32>
        %46 = arith.subf %44, %45 : vector<1x128xf32>
        %c0_29 = arith.constant 0 : index
        %c0_30 = arith.constant 0 : index
        %47 = vector.load %arg13[%c0_29, %c0_30] : memref<1x128xf32, #tpu.memory_space<vmem>>, vector<1x128xf32>
        tpu.vector_store %arg13[%c0_29, %c0_30], %46 {strides = array<i32>} : memref<1x128xf32, #tpu.memory_space<vmem>>, vector<1x128xf32>,
      } else {
      }
      %c8_i32 = arith.constant 8 : i32
      %9 = arith.muli %arg1, %c8_i32 : i32
      %10 = tpu.assume_multiple %9, 8 : i32
      %11 = arith.index_cast %10 : i32 to index
      %c0 = arith.constant 0 : index
      %12 = vector.load %arg9[%11, %c0] : memref<8x128xf32, #tpu.memory_space<vmem>>, vector<8x128xf32>
      %c0_4 = arith.constant 0 : index
      %c0_5 = arith.constant 0 : index
      %13 = vector.load %arg12[%c0_4, %c0_5] : memref<1x128xf32, #tpu.memory_space<vmem>>, vector<1x128xf32>
      %14 = vector.broadcast %13 : vector<1x128xf32> to vector<8x128xf32>
      %15 = arith.mulf %12, %14 : vector<8x128xf32>
      %c0_6 = arith.constant 0 : index
      %c0_7 = arith.constant 0 : index
      %16 = vector.load %arg13[%c0_6, %c0_7] : memref<1x128xf32, #tpu.memory_space<vmem>>, vector<1x128xf32>
      %17 = vector.broadcast %16 : vector<1x128xf32> to vector<8x128xf32>
      %18 = arith.addf %15, %17 : vector<8x128xf32>
      %cst = arith.constant 0.000000e+00 : f32
      %19 = vector.broadcast %cst : f32 to vector<8x128xf32>
      %20 = arith.maximumf %18, %19 : vector<8x128xf32>
      %21 = arith.truncf %20 : vector<8x128xf32> to vector<8x128xbf16>
      %c0_8 = arith.constant 0 : index
      %c0_9 = arith.constant 0 : index
      %22 = vector.load %arg6[%c0_8, %c0_9] : memref<128x128xbf16, #tpu.memory_space<vmem>>, vector<128x128xbf16>
      %cst_10 = arith.constant dense<0.000000e+00> : vector<8x128xf32>
      %23 = tpu.matmul %21, %22, %cst_10 {dimension_numbers = #tpu.dot_dimension_numbers<[1], [0], [0], [1], [0, 0, 1, 1], [], []>} : vector<8x128xbf16>, vector<128x128xbf16>, vector<8x128xf32> -> vector<8x128xf32>
      %c0_11 = arith.constant 0 : index
      %c0_12 = arith.constant 0 : index
      %24 = vector.load %arg7[%c0_11, %c0_12] : memref<1x128xf32, #tpu.memory_space<vmem>>, vector<1x128xf32>
      %25 = vector.broadcast %24 : vector<1x128xf32> to vector<8x128xf32>
      %26 = arith.addf %23, %25 : vector<8x128xf32>
      %c0_13 = arith.constant 0 : index
      %c0_14 = arith.constant 0 : index
      %27 = vector.load %arg8[%c0_13, %c0_14] : memref<8x128xf32, #tpu.memory_space<vmem>>, vector<8x128xf32>
      tpu.vector_store %arg8[%c0_13, %c0_14], %26 {strides = array<i32>} : memref<8x128xf32, #tpu.memory_space<vmem>>, vector<8x128xf32>,
    } else {
    }
    return
  }
  func.func @transform_0(%arg0: i32, %arg1: i32) -> (i32, i32) {
    %c1_i32 = arith.constant 1 : i32
    %0 = arith.subi %c1_i32, %arg0 : i32
    %1 = arith.muli %arg1, %0 : i32
    %c0_i32 = arith.constant 0 : i32
    %c0_i32_0 = arith.constant 0 : i32
    return %1, %c0_i32 : i32, i32
  }
  func.func @transform_1(%arg0: i32, %arg1: i32) -> (i32, i32) {
    %c0_i32 = arith.constant 0 : i32
    %c0_i32_0 = arith.constant 0 : i32
    %c0_i32_1 = arith.constant 0 : i32
    return %c0_i32, %c0_i32_0 : i32, i32
  }
  func.func @transform_2(%arg0: i32, %arg1: i32) -> (i32, i32) {
    %c0_i32 = arith.constant 0 : i32
    %c0_i32_0 = arith.constant 0 : i32
    %c0_i32_1 = arith.constant 0 : i32
    return %c0_i32, %c0_i32_0 : i32, i32
  }
  func.func @transform_3(%arg0: i32, %arg1: i32) -> (i32, i32) {
    %c0_i32 = arith.constant 0 : i32
    %c0_i32_0 = arith.constant 0 : i32
    %c0_i32_1 = arith.constant 0 : i32
    return %c0_i32, %c0_i32_0 : i32, i32
  }
  func.func @transform_4(%arg0: i32, %arg1: i32) -> (i32, i32) {
    %c0_i32 = arith.constant 0 : i32
    %c0_i32_0 = arith.constant 0 : i32
    %c0_i32_1 = arith.constant 0 : i32
    return %c0_i32, %c0_i32_0 : i32, i32
  }
  func.func @transform_5(%arg0: i32, %arg1: i32) -> (i32, i32) {
    %c0_i32 = arith.constant 0 : i32
    %c0_i32_0 = arith.constant 0 : i32
    %c0_i32_1 = arith.constant 0 : i32
    return %c0_i32, %c0_i32_0 : i32, i32
  }
  func.func @transform_6(%arg0: i32, %arg1: i32) -> (i32, i32) {
    %0 = arith.muli %arg1, %arg0 : i32
    %c0_i32 = arith.constant 0 : i32
    %c0_i32_0 = arith.constant 0 : i32
    return %0, %c0_i32 : i32, i32
  }
}

module attributes {stable_mosaic.version = 11 : i64} {
  func.func @_mlp_kernel(%arg0: i32, %arg1: i32, %arg2: memref<8x32xf32, #tpu.memory_space<vmem>>, %arg3: memref<32x128xbf16, #tpu.memory_space<vmem>>, %arg4: memref<1x128xf32, #tpu.memory_space<vmem>>, %arg5: memref<1x128xf32, #tpu.memory_space<vmem>>, %arg6: memref<128x128xbf16, #tpu.memory_space<vmem>>, %arg7: memref<1x128xf32, #tpu.memory_space<vmem>>, %arg8: memref<8x128xf32, #tpu.memory_space<vmem>>, %arg9: memref<8x128xf32, #tpu.memory_space<vmem>>, %arg10: memref<1x128xf32, #tpu.memory_space<vmem>>, %arg11: memref<1x128xf32, #tpu.memory_space<vmem>>, %arg12: memref<1x128xf32, #tpu.memory_space<vmem>>, %arg13: memref<1x128xf32, #tpu.memory_space<vmem>>) attributes {dimension_semantics = [#tpu.dimension_semantics<arbitrary>, #tpu.dimension_semantics<arbitrary>], iteration_bounds = array<i64: 2, 1>, scalar_prefetch = 0 : i64, scratch_operands = 5 : i64, tpu.core_type = #tpu.core_type<tc>, window_params = [{transform_indices = @transform_0, window_bounds = array<i64: 8, 32>}, {pipeline_mode = #tpu.pipeline_mode<synchronous>, transform_indices = @transform_1, window_bounds = array<i64: 32, 128>}, {pipeline_mode = #tpu.pipeline_mode<synchronous>, transform_indices = @transform_2, window_bounds = array<i64: 1, 128>}, {pipeline_mode = #tpu.pipeline_mode<synchronous>, transform_indices = @transform_3, window_bounds = array<i64: 1, 128>}, {pipeline_mode = #tpu.pipeline_mode<synchronous>, transform_indices = @transform_4, window_bounds = array<i64: 128, 128>}, {pipeline_mode = #tpu.pipeline_mode<synchronous>, transform_indices = @transform_5, window_bounds = array<i64: 1, 128>}, {transform_indices = @transform_6, window_bounds = array<i64: 8, 128>}]} {
    %c0_i32 = arith.constant 0 : i32
    %0 = arith.cmpi eq, %arg0, %c0_i32 : i32
    %1 = arith.extui %0 : i1 to i32
    %c0_i32_0 = arith.constant 0 : i32
    %2 = arith.cmpi ne, %1, %c0_i32_0 : i32
    scf.if %2 {
      %c0_i32_2 = arith.constant 0 : i32
      %6 = arith.cmpi eq, %arg1, %c0_i32_2 : i32
      %7 = arith.extui %6 : i1 to i32
      %c0_i32_3 = arith.constant 0 : i32
      %8 = arith.cmpi ne, %7, %c0_i32_3 : i32
      scf.if %8 {
        %cst_18 = arith.constant 0.000000e+00 : f32
        %28 = vector.broadcast %cst_18 : f32 to vector<1x128xf32>
        %c0_19 = arith.constant 0 : index
        %c0_20 = arith.constant 0 : index
        %29 = vector.load %arg10[%c0_19, %c0_20] : memref<1x128xf32, #tpu.memory_space<vmem>>, vector<1x128xf32>
        tpu.vector_store %arg10[%c0_19, %c0_20], %28 {strides = array<i32>} : memref<1x128xf32, #tpu.memory_space<vmem>>, vector<1x128xf32>,
        %cst_21 = arith.constant 0.000000e+00 : f32
        %30 = vector.broadcast %cst_21 : f32 to vector<1x128xf32>
        %c0_22 = arith.constant 0 : index
        %c0_23 = arith.constant 0 : index
        %31 = vector.load %arg11[%c0_22, %c0_23] : memref<1x128xf32, #tpu.memory_space<vmem>>, vector<1x128xf32>
        tpu.vector_store %arg11[%c0_22, %c0_23], %30 {strides = array<i32>} : memref<1x128xf32, #tpu.memory_space<vmem>>, vector<1x128xf32>,
      } else {
      }
      %c0 = arith.constant 0 : index
      %c0_4 = arith.constant 0 : index
      %9 = vector.load %arg2[%c0, %c0_4] : memref<8x32xf32, #tpu.memory_space<vmem>>, vector<8x32xf32>
      %10 = arith.truncf %9 : vector<8x32xf32> to vector<8x32xbf16>
      %c0_5 = arith.constant 0 : index
      %c0_6 = arith.constant 0 : index
      %11 = vector.load %arg3[%c0_5, %c0_6] : memref<32x128xbf16, #tpu.memory_space<vmem>>, vector<32x128xbf16>
      %cst = arith.constant dense<0.000000e+00> : vector<8x128xf32>
      %12 = tpu.matmul %10, %11, %cst {dimension_numbers = #tpu.dot_dimension_numbers<[1], [0], [0], [1], [0, 0, 1, 1], [], []>} : vector<8x32xbf16>, vector<32x128xbf16>, vector<8x128xf32> -> vector<8x128xf32>
      %c8_i32 = arith.constant 8 : i32
      %13 = arith.muli %arg1, %c8_i32 : i32
      %14 = tpu.assume_multiple %13, 8 : i32
      %15 = arith.index_cast %14 : i32 to index
      %c0_7 = arith.constant 0 : index
      %16 = vector.load %arg9[%15, %c0_7] : memref<8x128xf32, #tpu.memory_space<vmem>>, vector<8x128xf32>
      tpu.vector_store %arg9[%15, %c0_7], %12 {strides = array<i32>} : memref<8x128xf32, #tpu.memory_space<vmem>>, vector<8x128xf32>,
      %c0_8 = arith.constant 0 : index
      %c0_9 = arith.constant 0 : index
      %17 = vector.load %arg10[%c0_8, %c0_9] : memref<1x128xf32, #tpu.memory_space<vmem>>, vector<1x128xf32>
      %cst_10 = arith.constant dense<0.000000e+00> : vector<128xf32>
      %18 = vector.multi_reduction <add>, %12, %cst_10 [0] : vector<8x128xf32> to vector<128xf32>
      %19 = vector.shape_cast %18 : vector<128xf32> to vector<1x128xf32>
      %20 = arith.addf %17, %19 : vector<1x128xf32>
      %c0_11 = arith.constant 0 : index
      %c0_12 = arith.constant 0 : index
      %21 = vector.load %arg10[%c0_11, %c0_12] : memref<1x128xf32, #tpu.memory_space<vmem>>, vector<1x128xf32>
      tpu.vector_store %arg10[%c0_11, %c0_12], %20 {strides = array<i32>} : memref<1x128xf32, #tpu.memory_space<vmem>>, vector<1x128xf32>,
      %c0_13 = arith.constant 0 : index
      %c0_14 = arith.constant 0 : index
      %22 = vector.load %arg11[%c0_13, %c0_14] : memref<1x128xf32, #tpu.memory_space<vmem>>, vector<1x128xf32>
      %23 = arith.mulf %12, %12 : vector<8x128xf32>
      %cst_15 = arith.constant dense<0.000000e+00> : vector<128xf32>
      %24 = vector.multi_reduction <add>, %23, %cst_15 [0] : vector<8x128xf32> to vector<128xf32>
      %25 = vector.shape_cast %24 : vector<128xf32> to vector<1x128xf32>
      %26 = arith.addf %22, %25 : vector<1x128xf32>
      %c0_16 = arith.constant 0 : index
      %c0_17 = arith.constant 0 : index
      %27 = vector.load %arg11[%c0_16, %c0_17] : memref<1x128xf32, #tpu.memory_space<vmem>>, vector<1x128xf32>
      tpu.vector_store %arg11[%c0_16, %c0_17], %26 {strides = array<i32>} : memref<1x128xf32, #tpu.memory_space<vmem>>, vector<1x128xf32>,
    } else {
    }
    %c1_i32 = arith.constant 1 : i32
    %3 = arith.cmpi eq, %arg0, %c1_i32 : i32
    %4 = arith.extui %3 : i1 to i32
    %c0_i32_1 = arith.constant 0 : i32
    %5 = arith.cmpi ne, %4, %c0_i32_1 : i32
    scf.if %5 {
      %c0_i32_2 = arith.constant 0 : i32
      %6 = arith.cmpi eq, %arg1, %c0_i32_2 : i32
      %7 = arith.extui %6 : i1 to i32
      %c0_i32_3 = arith.constant 0 : i32
      %8 = arith.cmpi ne, %7, %c0_i32_3 : i32
      scf.if %8 {
        %c0_15 = arith.constant 0 : index
        %c0_16 = arith.constant 0 : index
        %28 = vector.load %arg10[%c0_15, %c0_16] : memref<1x128xf32, #tpu.memory_space<vmem>>, vector<1x128xf32>
        %cst_17 = arith.constant 1.250000e-01 : f32
        %29 = vector.broadcast %cst_17 : f32 to vector<1x128xf32>
        %30 = arith.mulf %28, %29 : vector<1x128xf32>
        %c0_18 = arith.constant 0 : index
        %c0_19 = arith.constant 0 : index
        %31 = vector.load %arg11[%c0_18, %c0_19] : memref<1x128xf32, #tpu.memory_space<vmem>>, vector<1x128xf32>
        %cst_20 = arith.constant 1.250000e-01 : f32
        %32 = vector.broadcast %cst_20 : f32 to vector<1x128xf32>
        %33 = arith.mulf %31, %32 : vector<1x128xf32>
        %34 = arith.mulf %30, %30 : vector<1x128xf32>
        %35 = arith.subf %33, %34 : vector<1x128xf32>
        %cst_21 = arith.constant 0.000000e+00 : f32
        %36 = vector.broadcast %cst_21 : f32 to vector<1x128xf32>
        %37 = arith.maximumf %35, %36 : vector<1x128xf32>
        %c0_22 = arith.constant 0 : index
        %c0_23 = arith.constant 0 : index
        %38 = vector.load %arg4[%c0_22, %c0_23] : memref<1x128xf32, #tpu.memory_space<vmem>>, vector<1x128xf32>
        %cst_24 = arith.constant 9.99999974E-6 : f32
        %39 = vector.broadcast %cst_24 : f32 to vector<1x128xf32>
        %40 = arith.addf %37, %39 : vector<1x128xf32>
        %41 = math.rsqrt %40 : vector<1x128xf32>
        %42 = arith.mulf %38, %41 : vector<1x128xf32>
        %c0_25 = arith.constant 0 : index
        %c0_26 = arith.constant 0 : index
        %43 = vector.load %arg12[%c0_25, %c0_26] : memref<1x128xf32, #tpu.memory_space<vmem>>, vector<1x128xf32>
        tpu.vector_store %arg12[%c0_25, %c0_26], %42 {strides = array<i32>} : memref<1x128xf32, #tpu.memory_space<vmem>>, vector<1x128xf32>,
        %c0_27 = arith.constant 0 : index
        %c0_28 = arith.constant 0 : index
        %44 = vector.load %arg5[%c0_27, %c0_28] : memref<1x128xf32, #tpu.memory_space<vmem>>, vector<1x128xf32>
        %45 = arith.mulf %30, %42 : vector<1x128xf32>
        %46 = arith.subf %44, %45 : vector<1x128xf32>
        %c0_29 = arith.constant 0 : index
        %c0_30 = arith.constant 0 : index
        %47 = vector.load %arg13[%c0_29, %c0_30] : memref<1x128xf32, #tpu.memory_space<vmem>>, vector<1x128xf32>
        tpu.vector_store %arg13[%c0_29, %c0_30], %46 {strides = array<i32>} : memref<1x128xf32, #tpu.memory_space<vmem>>, vector<1x128xf32>,
      } else {
      }
      %c8_i32 = arith.constant 8 : i32
      %9 = arith.muli %arg1, %c8_i32 : i32
      %10 = tpu.assume_multiple %9, 8 : i32
      %11 = arith.index_cast %10 : i32 to index
      %c0 = arith.constant 0 : index
      %12 = vector.load %arg9[%11, %c0] : memref<8x128xf32, #tpu.memory_space<vmem>>, vector<8x128xf32>
      %c0_4 = arith.constant 0 : index
      %c0_5 = arith.constant 0 : index
      %13 = vector.load %arg12[%c0_4, %c0_5] : memref<1x128xf32, #tpu.memory_space<vmem>>, vector<1x128xf32>
      %14 = vector.broadcast %13 : vector<1x128xf32> to vector<8x128xf32>
      %15 = arith.mulf %12, %14 : vector<8x128xf32>
      %c0_6 = arith.constant 0 : index
      %c0_7 = arith.constant 0 : index
      %16 = vector.load %arg13[%c0_6, %c0_7] : memref<1x128xf32, #tpu.memory_space<vmem>>, vector<1x128xf32>
      %17 = vector.broadcast %16 : vector<1x128xf32> to vector<8x128xf32>
      %18 = arith.addf %15, %17 : vector<8x128xf32>
      %cst = arith.constant 0.000000e+00 : f32
      %19 = vector.broadcast %cst : f32 to vector<8x128xf32>
      %20 = arith.maximumf %18, %19 : vector<8x128xf32>
      %21 = arith.truncf %20 : vector<8x128xf32> to vector<8x128xbf16>
      %c0_8 = arith.constant 0 : index
      %c0_9 = arith.constant 0 : index
      %22 = vector.load %arg6[%c0_8, %c0_9] : memref<128x128xbf16, #tpu.memory_space<vmem>>, vector<128x128xbf16>
      %cst_10 = arith.constant dense<0.000000e+00> : vector<8x128xf32>
      %23 = tpu.matmul %21, %22, %cst_10 {dimension_numbers = #tpu.dot_dimension_numbers<[1], [0], [0], [1], [0, 0, 1, 1], [], []>} : vector<8x128xbf16>, vector<128x128xbf16>, vector<8x128xf32> -> vector<8x128xf32>
      %c0_11 = arith.constant 0 : index
      %c0_12 = arith.constant 0 : index
      %24 = vector.load %arg7[%c0_11, %c0_12] : memref<1x128xf32, #tpu.memory_space<vmem>>, vector<1x128xf32>
      %25 = vector.broadcast %24 : vector<1x128xf32> to vector<8x128xf32>
      %26 = arith.addf %23, %25 : vector<8x128xf32>
      %c0_13 = arith.constant 0 : index
      %c0_14 = arith.constant 0 : index
      %27 = vector.load %arg8[%c0_13, %c0_14] : memref<8x128xf32, #tpu.memory_space<vmem>>, vector<8x128xf32>
      tpu.vector_store %arg8[%c0_13, %c0_14], %26 {strides = array<i32>} : memref<8x128xf32, #tpu.memory_space<vmem>>, vector<8x128xf32>,
    } else {
    }
    return
  }
  func.func @transform_0(%arg0: i32, %arg1: i32) -> (i32, i32) {
    %c1_i32 = arith.constant 1 : i32
    %0 = arith.subi %c1_i32, %arg0 : i32
    %1 = arith.muli %arg1, %0 : i32
    %c0_i32 = arith.constant 0 : i32
    %c0_i32_0 = arith.constant 0 : i32
    return %1, %c0_i32 : i32, i32
  }
  func.func @transform_1(%arg0: i32, %arg1: i32) -> (i32, i32) {
    %c0_i32 = arith.constant 0 : i32
    %c0_i32_0 = arith.constant 0 : i32
    %c0_i32_1 = arith.constant 0 : i32
    return %c0_i32, %c0_i32_0 : i32, i32
  }
  func.func @transform_2(%arg0: i32, %arg1: i32) -> (i32, i32) {
    %c0_i32 = arith.constant 0 : i32
    %c0_i32_0 = arith.constant 0 : i32
    %c0_i32_1 = arith.constant 0 : i32
    return %c0_i32, %c0_i32_0 : i32, i32
  }
  func.func @transform_3(%arg0: i32, %arg1: i32) -> (i32, i32) {
    %c0_i32 = arith.constant 0 : i32
    %c0_i32_0 = arith.constant 0 : i32
    %c0_i32_1 = arith.constant 0 : i32
    return %c0_i32, %c0_i32_0 : i32, i32
  }
  func.func @transform_4(%arg0: i32, %arg1: i32) -> (i32, i32) {
    %c0_i32 = arith.constant 0 : i32
    %c0_i32_0 = arith.constant 0 : i32
    %c0_i32_1 = arith.constant 0 : i32
    return %c0_i32, %c0_i32_0 : i32, i32
  }
  func.func @transform_5(%arg0: i32, %arg1: i32) -> (i32, i32) {
    %c0_i32 = arith.constant 0 : i32
    %c0_i32_0 = arith.constant 0 : i32
    %c0_i32_1 = arith.constant 0 : i32
    return %c0_i32, %c0_i32_0 : i32, i32
  }
  func.func @transform_6(%arg0: i32, %arg1: i32) -> (i32, i32) {
    %0 = arith.muli %arg1, %arg0 : i32
    %c0_i32 = arith.constant 0 : i32
    %c0_i32_0 = arith.constant 0 : i32
    return %0, %c0_i32 : i32, i32
  }
}

</mosaic_0001>

<llo_original>
// kernel: tpu_custom_call.1
$region0: #{tpu_custom_call.1}
  #allocation0 [shape = 'u32[]', space=smem, size = 0x4, offset = 0x4, fixed_abs, tag = 'smem constant byte address 0x4 - core index']
  #allocation1 [shape = 'u32[144,128]{1,0:T(1,128)}', space=vmem, size = 0x12000, scoped, tag = 'internal scratch']
  #allocation2 [shape = 'f32[8,128]{1,0:T(8,128)}', space=vmem, size = 0x1000, scoped, tag = 'scratch operand']
  #allocation3 [shape = 'f32[1,128]{1,0:T(1,128)}', space=vmem, size = 0x200, scoped, tag = 'scratch operand']
  #allocation4 [shape = 'f32[1,128]{1,0:T(1,128)}', space=vmem, size = 0x200, scoped, tag = 'scratch operand']
  #allocation5 [shape = 'f32[1,128]{1,0:T(1,128)}', space=vmem, size = 0x200, scoped, tag = 'scratch operand']
  #allocation6 [shape = 'f32[1,128]{1,0:T(1,128)}', space=vmem, size = 0x200, scoped, tag = 'scratch operand']
  %s0 = inlined_call_operand.hbm [shape: f32[8,32], index: 0, kind: input, shape index: {}]
  %s1 = inlined_call_operand.hbm [shape: bf16[32,128], index: 1, kind: input, shape index: {}]
  %s2 = inlined_call_operand.vmem [shape: f32[1,128], index: 2, kind: input, shape index: {}]
  %s3 = inlined_call_operand.vmem [shape: f32[1,128], index: 3, kind: input, shape index: {}]
  %s4 = inlined_call_operand.hbm [shape: bf16[128,128], index: 4, kind: input, shape index: {}]
  %s5 = inlined_call_operand.vmem [shape: f32[1,128], index: 5, kind: input, shape index: {}]
  %s6 = inlined_call_operand.hbm [shape: f32[8,128], index: 6, kind: output, shape index: {}]
  %s7 = sld [smem:[#allocation0]]
  $region85: #{tpu_custom_call.1} parent=0
    _
  %s9 = ssub.s32 1, %s7
  %s10 = scalar_select 0, %s9, %s7
  $region1: #{tpu_custom_call.1} parent=0
    #allocation7 [shape = 'u8[8192]{0}', space=vmem, size = 0x2000, scoped, tag = 'input window, operand 0']
    #allocation8 [shape = 's32[2]{0}', space=sflag, size = 0x8, scoped, tag = 'scoped memory for tpu_custom_call.1']
    #allocation9 [shape = 's32[2]{0}', space=sflag, size = 0x8, scoped, tag = 'scoped memory for tpu_custom_call.1']
    #allocation10 [shape = 'u8[8192]{0}', space=vmem, size = 0x2000, scoped, tag = 'input window, operand 1, single buffered']
    #allocation11 [shape = 's32[1]{0}', space=sflag, size = 0x4, scoped, tag = 'scoped memory for tpu_custom_call.1']
    #allocation12 [shape = 'u8[32768]{0}', space=vmem, size = 0x8000, scoped, tag = 'input window, operand 4, single buffered']
    #allocation13 [shape = 'u8[8192]{0}', space=vmem, size = 0x2000, scoped, tag = 'output window, operand 0']
    %11 = vsyncpa [#allocation8], 0
    %s12 = scalar_lea.sflag [#allocation8], 1
    %13 = vsyncpa %s12, 0
    %14 = vsyncpa [#allocation11], 0
    %15 = vsyncpa [#allocation9], 0
    %s16 = scalar_lea.sflag [#allocation9], 1
    %17 = vsyncpa %s16, 0
    loop: start=0, step=1, limit=4
    $region2: #{tpu_custom_call.1} parent=1 // loop_pre_header
      _
    $region3: #{tpu_custom_call.1} parent=1 // loop_header
      %s19 = sphi 0, %s23
      %p20 = scmp.ge.s32.totalorder %s19, 4
      %s26 = sphi 0, %s38
      %s27 = sphi 0, %s34
      %s28 = sphi 0, %s26
      %s29 = sphi 0, %s27
      %s30 = sphi 0, %s28
      %s31 = sphi 0, %s29
      %s45 = sphi 0, %s47
      %s48 = sphi 0, %s45
      %s49 = sphi 0, %s48
      %s65 = sphi 0, %s49
      %s69 = sphi 0, %s69
      %s71 = sphi 0, %s69
      %s72 = sphi 0, %s71
      %s86 = sphi 0, %s72
      %s90 = sphi 0, %s90
      %s92 = sphi 0, %s90
      %s93 = sphi 0, %s92
      %s107 = sphi 0, %s93
      %s111 = sphi 0, %s111
      %s113 = sphi 0, %s111
      %s114 = sphi 0, %s113
      %s128 = sphi 0, %s114
      %s132 = sphi 0, %s132
      %s134 = sphi 0, %s132
      %s135 = sphi 0, %s134
      %s149 = sphi 0, %s135
      %s153 = sphi 0, %s153
      %s155 = sphi 0, %s153
      %s156 = sphi 0, %s155
      %s170 = sphi 0, %s156
      %s178 = sphi 0, %s180
      %s181 = sphi 0, %s178
      %s182 = sphi 0, %s181
      %s198 = sphi 0, %s182
    $region4: #{tpu_custom_call.1} parent=1 // loop_header_branch
      %22 = sbr.rel (%p20) target = $region8
    $region5: #{tpu_custom_call.1} parent=1 // loop_body
      %s24 = ssub.s32 %s19, 1
      %s25 = ssub.s32 %s19, 2
      %s32 = sadd.s32 1, %s27
      %p33 = scmp.ge.s32.totalorder %s32, 1
      %s34 = scalar_select %p33, 0, %s32
      %s35 = sadd.s32 1, %s26
      %s36 = scalar_select %p33, %s35, %s26
      %p37 = scmp.ge.s32.totalorder %s36, 2
      %s38 = scalar_select %p37, 0, %s36
      %s39 = ssub.s32 1, %s26
      %s40 = smul.u32 %s27, %s39
      %s41 = ssub.s32 1, %s38
      %s42 = smul.u32 %s34, %s41
      %s43 = ssub.s32 %s40, %s42
      %p44 = scmp.eq.s32.totalorder %s43, 0
      %s46 = sadd.s32 %s45, 1
      %s47 = scalar_select %p44, %s45, %s46
      %p50 = pneg %p44
      %p51 = scmp.eq.s32.totalorder %s19, 1
      %p52 = por %p50, %p51
      %p53 = scmp.ne.s32.totalorder %s45, %s48
      %p54 = scmp.eq.s32.totalorder %s19, 0
      %p55 = por %p53, %p54
      %p56 = scmp.ne.s32.totalorder %s45, %s48
      %p57 = scmp.eq.s32.totalorder %s24, 1
      %p58 = por %p56, %p57
      %p59 = scmp.ne.s32.totalorder %s48, %s49
      %p60 = scmp.eq.s32.totalorder %s24, 0
      %p61 = por %p59, %p60
      %p62 = scmp.ne.s32.totalorder %s48, %s49
      %p63 = scmp.eq.s32.totalorder %s25, 1
      %p64 = por %p62, %p63
      %p66 = scmp.ne.s32.totalorder %s49, %s65
      %p67 = scmp.eq.s32.totalorder %s25, 0
      %p68 = por %p66, %p67
      %s70 = sadd.s32 %s69, 1
      %p73 = scmp.eq.s32.totalorder %s19, 1
      %p74 = scmp.ne.s32.totalorder %s69, %s71
      %p75 = scmp.eq.s32.totalorder %s19, 0
      %p76 = por %p74, %p75
      %p77 = scmp.ne.s32.totalorder %s69, %s71
      %p78 = scmp.eq.s32.totalorder %s24, 1
      %p79 = por %p77, %p78
      %p80 = scmp.ne.s32.totalorder %s71, %s72
      %p81 = scmp.eq.s32.totalorder %s24, 0
      %p82 = por %p80, %p81
      %p83 = scmp.ne.s32.totalorder %s71, %s72
      %p84 = scmp.eq.s32.totalorder %s25, 1
      %p85 = por %p83, %p84
      %p87 = scmp.ne.s32.totalorder %s72, %s86
      %p88 = scmp.eq.s32.totalorder %s25, 0
      %p89 = por %p87, %p88
      %s91 = sadd.s32 %s90, 1
      %p94 = scmp.eq.s32.totalorder %s19, 1
      %p95 = scmp.ne.s32.totalorder %s90, %s92
      %p96 = scmp.eq.s32.totalorder %s19, 0
      %p97 = por %p95, %p96
      %p98 = scmp.ne.s32.totalorder %s90, %s92
      %p99 = scmp.eq.s32.totalorder %s24, 1
      %p100 = por %p98, %p99
      %p101 = scmp.ne.s32.totalorder %s92, %s93
      %p102 = scmp.eq.s32.totalorder %s24, 0
      %p103 = por %p101, %p102
      %p104 = scmp.ne.s32.totalorder %s92, %s93
      %p105 = scmp.eq.s32.totalorder %s25, 1
      %p106 = por %p104, %p105
      %p108 = scmp.ne.s32.totalorder %s93, %s107
      %p109 = scmp.eq.s32.totalorder %s25, 0
      %p110 = por %p108, %p109
      %s112 = sadd.s32 %s111, 1
      %p115 = scmp.eq.s32.totalorder %s19, 1
      %p116 = scmp.ne.s32.totalorder %s111, %s113
      %p117 = scmp.eq.s32.totalorder %s19, 0
      %p118 = por %p116, %p117
      %p119 = scmp.ne.s32.totalorder %s111, %s113
      %p120 = scmp.eq.s32.totalorder %s24, 1
      %p121 = por %p119, %p120
      %p122 = scmp.ne.s32.totalorder %s113, %s114
      %p123 = scmp.eq.s32.totalorder %s24, 0
      %p124 = por %p122, %p123
      %p125 = scmp.ne.s32.totalorder %s113, %s114
      %p126 = scmp.eq.s32.totalorder %s25, 1
      %p127 = por %p125, %p126
      %p129 = scmp.ne.s32.totalorder %s114, %s128
      %p130 = scmp.eq.s32.totalorder %s25, 0
      %p131 = por %p129, %p130
      %s133 = sadd.s32 %s132, 1
      %p136 = scmp.eq.s32.totalorder %s19, 1
      %p137 = scmp.ne.s32.totalorder %s132, %s134
      %p138 = scmp.eq.s32.totalorder %s19, 0
      %p139 = por %p137, %p138
      %p140 = scmp.ne.s32.totalorder %s132, %s134
      %p141 = scmp.eq.s32.totalorder %s24, 1
      %p142 = por %p140, %p141
      %p143 = scmp.ne.s32.totalorder %s134, %s135
      %p144 = scmp.eq.s32.totalorder %s24, 0
      %p145 = por %p143, %p144
      %p146 = scmp.ne.s32.totalorder %s134, %s135
      %p147 = scmp.eq.s32.totalorder %s25, 1
      %p148 = por %p146, %p147
      %p150 = scmp.ne.s32.totalorder %s135, %s149
      %p151 = scmp.eq.s32.totalorder %s25, 0
      %p152 = por %p150, %p151
      %s154 = sadd.s32 %s153, 1
      %p157 = scmp.eq.s32.totalorder %s19, 1
      %p158 = scmp.ne.s32.totalorder %s153, %s155
      %p159 = scmp.eq.s32.totalorder %s19, 0
      %p160 = por %p158, %p159
      %p161 = scmp.ne.s32.totalorder %s153, %s155
      %p162 = scmp.eq.s32.totalorder %s24, 1
      %p163 = por %p161, %p162
      %p164 = scmp.ne.s32.totalorder %s155, %s156
      %p165 = scmp.eq.s32.totalorder %s24, 0
      %p166 = por %p164, %p165
      %p167 = scmp.ne.s32.totalorder %s155, %s156
      %p168 = scmp.eq.s32.totalorder %s25, 1
      %p169 = por %p167, %p168
      %p171 = scmp.ne.s32.totalorder %s156, %s170
      %p172 = scmp.eq.s32.totalorder %s25, 0
      %p173 = por %p171, %p172
      %s174 = smul.u32 %s27, %s26
      %s175 = smul.u32 %s34, %s38
      %s176 = ssub.s32 %s174, %s175
      %p177 = scmp.eq.s32.totalorder %s176, 0
      %s179 = sadd.s32 %s178, 1
      %s180 = scalar_select %p177, %s178, %s179
      %p183 = pneg %p177
      %p184 = scmp.eq.s32.totalorder %s19, 1
      %p185 = por %p183, %p184
      %p186 = scmp.ne.s32.totalorder %s178, %s181
      %p187 = scmp.eq.s32.totalorder %s19, 0
      %p188 = por %p186, %p187
      %p189 = scmp.ne.s32.totalorder %s178, %s181
      %p190 = scmp.eq.s32.totalorder %s24, 1
      %p191 = por %p189, %p190
      %p192 = scmp.ne.s32.totalorder %s181, %s182
      %p193 = scmp.eq.s32.totalorder %s24, 0
      %p194 = por %p192, %p193
      %p195 = scmp.ne.s32.totalorder %s181, %s182
      %p196 = scmp.eq.s32.totalorder %s25, 1
      %p197 = por %p195, %p196
      %p199 = scmp.ne.s32.totalorder %s182, %s198
      %p200 = scmp.eq.s32.totalorder %s25, 0
      %p201 = por %p199, %p200
      %p202 = scmp.le.s32.totalorder 1, %s19
      %p203 = scmp.lt.s32.totalorder %s19, 3
      %p204 = pnand %p202, %p203
      %p205 = pneg %p204
      // Predicated region
      $region9: #{tpu_custom_call.1} parent=5 // pred_check
        _
      $region10: #{tpu_custom_call.1} parent=5 // pred_check_branch
        %207 = sbr.rel (%p204) target = $region12
      $region11: #{tpu_custom_call.1} parent=5 // pred_region
        %s208 = ssub.s32 %s19, 1
        // Predicated region
        $region13: #{tpu_custom_call.1} parent=11 // pred_check
          %p209 = pneg %p82
        $region14: #{tpu_custom_call.1} parent=11 // pred_check_branch
          %211 = sbr.rel (%p209) target = $region16
        $region15: #{tpu_custom_call.1} parent=11 // pred_region
          %s213 = ssub.s32 256, 256
          %214 = vsyncadd [#allocation11], %s213
          %s215 = sshll.u32 [#allocation10], 4
          %s216 = int_to_ptr.vmem [resolvable:$true] %s215
          %221 = dma.hbm_to_vmem [thread:$0]  %s1, 256, %s216, [#allocation11], 64, 64, 4
        $region16: #{tpu_custom_call.1} parent=11 // pred_fallthru
          _
        // Predicated region
        $region17: #{tpu_custom_call.1} parent=11 // pred_check
          %p222 = pneg %p103
        $region18: #{tpu_custom_call.1} parent=11 // pred_check_branch
          %224 = sbr.rel (%p222) target = $region20
        $region19: #{tpu_custom_call.1} parent=11 // pred_region
          _
        $region20: #{tpu_custom_call.1} parent=11 // pred_fallthru
          _
        // Predicated region
        $region21: #{tpu_custom_call.1} parent=11 // pred_check
          %p225 = pneg %p124
        $region22: #{tpu_custom_call.1} parent=11 // pred_check_branch
          %227 = sbr.rel (%p225) target = $region24
        $region23: #{tpu_custom_call.1} parent=11 // pred_region
          _
        $region24: #{tpu_custom_call.1} parent=11 // pred_fallthru
          _
        // Predicated region
        $region25: #{tpu_custom_call.1} parent=11 // pred_check
          %p228 = pneg %p145
        $region26: #{tpu_custom_call.1} parent=11 // pred_check_branch
          %230 = sbr.rel (%p228) target = $region28
        $region27: #{tpu_custom_call.1} parent=11 // pred_region
          %s232 = ssub.s32 1024, 1024
          %233 = vsyncadd [#allocation11], %s232
          %s234 = sshll.u32 [#allocation12], 4
          %s235 = int_to_ptr.vmem [resolvable:$true] %s234
          %240 = dma.hbm_to_vmem [thread:$0]  %s4, 1024, %s235, [#allocation11], 64, 64, 4
        $region28: #{tpu_custom_call.1} parent=11 // pred_fallthru
          _
        // Predicated region
        $region29: #{tpu_custom_call.1} parent=11 // pred_check
          %p241 = pneg %p166
        $region30: #{tpu_custom_call.1} parent=11 // pred_check_branch
          %243 = sbr.rel (%p241) target = $region32
        $region31: #{tpu_custom_call.1} parent=11 // pred_region
          _
        $region32: #{tpu_custom_call.1} parent=11 // pred_fallthru
          _
      $region12: #{tpu_custom_call.1} parent=5 // pred_fallthru
        _
      %p244 = scmp.lt.s32.totalorder %s19, 2
      // Predicated region
      $region33: #{tpu_custom_call.1} parent=5 // pred_check
        %p245 = pneg %p244
      $region34: #{tpu_custom_call.1} parent=5 // pred_check_branch
        %247 = sbr.rel (%p245) target = $region36
      $region35: #{tpu_custom_call.1} parent=5 // pred_region
        // Predicated region
        $region37: #{tpu_custom_call.1} parent=35 // pred_check
          %p248 = pneg %p55
        $region38: #{tpu_custom_call.1} parent=35 // pred_check_branch
          %250 = sbr.rel (%p248) target = $region40
        $region39: #{tpu_custom_call.1} parent=35 // pred_region
          %s251 = sand.u32 %s45, 1
          %s252 = scalar_lea.sflag [#allocation8], %s251
          %s253 = sand.u32 %s45, 1
          %s254 = smul.addr %s253, 8
          %s255 = scalar_lea.vmem [#allocation7], %s254
          %s256 = ssub.s32 1, %s26
          %s257 = smul.u32 %s27, %s256
          %s259 = ssub.s32 128, 128
          %260 = vsyncadd %s252, %s259
          %s261 = smul.addr %s257, 128
          %s262 = scalar_lea.hbm %s0, %s261
          %s264 = sshll.u32 %s255, 4
          %s265 = int_to_ptr.vmem [resolvable:$true] %s264
          %267 = dma.hbm_to_vmem [thread:$0]  %s262, 128, %s265, %s252
        $region40: #{tpu_custom_call.1} parent=35 // pred_fallthru
          _
      $region36: #{tpu_custom_call.1} parent=5 // pred_fallthru
        _
      %p268 = scmp.le.s32.totalorder 1, %s19
      %p269 = scmp.lt.s32.totalorder %s19, 3
      %p270 = pnand %p268, %p269
      %p271 = pneg %p270
      // Predicated region
      $region41: #{tpu_custom_call.1} parent=5 // pred_check
        _
      $region42: #{tpu_custom_call.1} parent=5 // pred_check_branch
        %273 = sbr.rel (%p270) target = $region44
      $region43: #{tpu_custom_call.1} parent=5 // pred_region
        %s274 = ssub.s32 %s19, 1
        %s275 = sand.u32 %s48, 1
        %s276 = scalar_lea.sflag [#allocation8], %s275
        %s277 = sand.u32 %s48, 1
        %s278 = smul.addr %s277, 8
        %s279 = scalar_lea.vmem [#allocation7], %s278
        // Predicated region
        $region45: #{tpu_custom_call.1} parent=43 // pred_check
          %p280 = pneg %p61
        $region46: #{tpu_custom_call.1} parent=43 // pred_check_branch
          %282 = sbr.rel (%p280) target = $region48
        $region47: #{tpu_custom_call.1} parent=43 // pred_region
          %283 = dma.done %s276, 128
        $region48: #{tpu_custom_call.1} parent=43 // pred_fallthru
          _
        // Predicated region
        $region49: #{tpu_custom_call.1} parent=43 // pred_check
          %p284 = pneg %p82
        $region50: #{tpu_custom_call.1} parent=43 // pred_check_branch
          %286 = sbr.rel (%p284) target = $region52
        $region51: #{tpu_custom_call.1} parent=43 // pred_region
          %287 = dma.done [#allocation11], 256
        $region52: #{tpu_custom_call.1} parent=43 // pred_fallthru
          _
        // Predicated region
        $region53: #{tpu_custom_call.1} parent=43 // pred_check
          %p288 = pneg %p145
        $region54: #{tpu_custom_call.1} parent=43 // pred_check_branch
          %290 = sbr.rel (%p288) target = $region56
        $region55: #{tpu_custom_call.1} parent=43 // pred_region
          %291 = dma.done [#allocation11], 1024
        $region56: #{tpu_custom_call.1} parent=43 // pred_fallthru
          _
        %s292 = sand.u32 %s48, 1
        %s293 = scalar_lea.sflag [#allocation8], %s292
        %s294 = sand.u32 %s48, 1
        %s295 = smul.addr %s294, 8
        %s296 = scalar_lea.vmem [#allocation7], %s295
        %p297 = pneg %p61
        %p298 = pneg %p58
        %p299 = pneg %p82
        %p300 = pneg %p79
        %p301 = pneg %p103
        %p302 = pneg %p100
        %p303 = pneg %p124
        %p304 = pneg %p121
        %p305 = pneg %p145
        %p306 = pneg %p142
        %p307 = pneg %p166
        %p308 = pneg %p163
        %p309 = pneg %p194
        %p310 = pneg %p191
        %s311 = sand.u32 %s181, 1
        %s312 = scalar_lea.sflag [#allocation9], %s311
        %s313 = sand.u32 %s181, 1
        %s314 = smul.addr %s313, 8
        %s315 = scalar_lea.vmem [#allocation13], %s314
        %s316 = ssub.s32 1, %s28
        %s317 = smul.u32 %s29, %s316
        %s318 = smul.u32 %s29, %s28
        %p320 = scmp.eq.s32.totalorder %s28, 0
        // Predicated region
        $region57: #{tpu_custom_call.1} parent=43 // pred_check
          %p321 = pneg %p320
        $region58: #{tpu_custom_call.1} parent=43 // pred_check_branch
          %323 = sbr.rel (%p321) target = $region60
        $region59: #{tpu_custom_call.1} parent=43 // pred_region
          %p324 = scmp.eq.s32.totalorder %s29, 0
          // Predicated region
          $region61: #{tpu_custom_call.1} parent=59 // pred_check
            %p325 = pneg %p324
          $region62: #{tpu_custom_call.1} parent=59 // pred_check_branch
            %327 = sbr.rel (%p325) target = $region64
          $region63: #{tpu_custom_call.1} parent=59 // pred_region
            %328 = vst [vmem:[#allocation3] sm:$0x1] 0.0
            %329 = vst [vmem:[#allocation4] sm:$0x1] 0.0
          $region64: #{tpu_custom_call.1} parent=59 // pred_fallthru
            _
          %v330 = vld [vmem:[%s279] sm:$0xff]
          %v331 = vpack.c.bf16 %v330, %v330
          %v332 = vld [vmem:[#allocation10] sm:$0xf]
          %v333 = vld [vmem:[#allocation10 + $0x4] sm:$0xf]
          %v334 = vld [vmem:[#allocation10 + $0x8] sm:$0xf]
          %v335 = vld [vmem:[#allocation10 + $0xc] sm:$0xf]
          %v340 = vunpack.c.l.b16 %v332
          %v341 = vunpack.c.l.b16 %v333
          %v342 = vunpack.c.l.b16 %v334
          %v343 = vunpack.c.l.b16 %v335
          %v344 = vpack.c.b16 %v341, %v340
          %v345 = vpack.c.b16 %v343, %v342
          %vm348 = vcmask 261120
          %v350 = vsel %vm348, %v331, 0
          %352 = vmatprep.subr.bf16.mxu0 0
          %353 = vmatpush1.bf16.msra.mxu0 %v344
          %354 = vmatprep.subr.bf16.mxu0 0
          %355 = vmatpush1.bf16.msra.mxu0 %v345
          %356 = vmatprep.subr.bf16.mxu0 0
          %357 = vmatpush1.bf16.msra.mxu0 0
          %358 = vmatprep.subr.bf16.mxu0 0
          %359 = vmatpush1.bf16.msra.mxu0 0
          %360 = vmatprep.subr.bf16.mxu0 0
          %361 = vmatpush1.bf16.msra.mxu0 0
          %362 = vmatprep.subr.bf16.mxu0 0
          %363 = vmatpush1.bf16.msra.mxu0 0
          %364 = vmatprep.subr.bf16.mxu0 0
          %365 = vmatpush1.bf16.msra.mxu0 0
          %366 = vmatprep.subr.bf16.mxu0 0
          %367 = vmatpush1.bf16.msra.mxu0 0
          %368 = vmatprep.subr.bf16.mxu0 0
          %369 = vmatpush1.bf16.msra.mxu0 0
          %370 = vmatprep.subr.bf16.mxu0 0
          %371 = vmatpush1.bf16.msra.mxu0 0
          %372 = vmatprep.subr.bf16.mxu0 0
          %373 = vmatpush1.bf16.msra.mxu0 0
          %374 = vmatprep.subr.bf16.mxu0 0
          %375 = vmatpush1.bf16.msra.mxu0 0
          %376 = vmatprep.subr.bf16.mxu0 0
          %377 = vmatpush1.bf16.msra.mxu0 0
          %378 = vmatprep.subr.bf16.mxu0 0
          %379 = vmatpush1.bf16.msra.mxu0 0
          %380 = vmatprep.subr.bf16.mxu0 0
          %381 = vmatpush1.bf16.msra.mxu0 0
          %382 = vmatprep.subr.bf16.mxu0 0
          %383 = vmatpush1.bf16.msra.mxu0 0
          %384 = vmatprep.mubr.bf16.mxu0 0
          %385 = vmatmul.mubr.bf16.gmra.mrb[0].mxu0 %v350
          %v386 = vpop.f32.mrb[0].mxu0
          %v387 = vadd.f32 0.0, %v386
          %v388 = vpop.f32.mrb[0].mxu0
          %v389 = vpop.f32.mrb[0].mxu0
          %v390 = vpop.f32.mrb[0].mxu0
          %391 = vdwg.mxu0
          %s392 = smul.u32 %s29, 8
          %s393 = scalar_lea.vmem [#allocation2], %s392
          %394 = vst [vmem:[%s393] sm:$0xff] %v387
          %v395 = vld [vmem:[#allocation3] sm:$0x1]
          %v396 = vrot.slane %v387, 4
          %v397 = vadd.f32 %v387, %v396
          %v398 = vrot.slane %v397, 2
          %v399 = vadd.f32 %v397, %v398
          %v400 = vrot.slane %v399, 1
          %v401 = vadd.f32 %v399, %v400
          %v402 = vadd.f32 %v395, %v401
          %403 = vst [vmem:[#allocation3] sm:$0x1] %v402
          %v404 = vld [vmem:[#allocation4] sm:$0x1]
          %v405 = vmul.f32 %v387, %v387
          %v406 = vrot.slane %v405, 4
          %v407 = vadd.f32 %v405, %v406
          %v408 = vrot.slane %v407, 2
          %v409 = vadd.f32 %v407, %v408
          %v410 = vrot.slane %v409, 1
          %v411 = vadd.f32 %v409, %v410
          %v412 = vadd.f32 %v404, %v411
          %413 = vst [vmem:[#allocation4] sm:$0x1] %v412
        $region60: #{tpu_custom_call.1} parent=43 // pred_fallthru
          _
        %p414 = scmp.eq.s32.totalorder %s28, 1
        // Predicated region
        $region65: #{tpu_custom_call.1} parent=43 // pred_check
          %p415 = pneg %p414
        $region66: #{tpu_custom_call.1} parent=43 // pred_check_branch
          %417 = sbr.rel (%p415) target = $region68
        $region67: #{tpu_custom_call.1} parent=43 // pred_region
          %p418 = scmp.eq.s32.totalorder %s29, 0
          // Predicated region
          $region69: #{tpu_custom_call.1} parent=67 // pred_check
            %p419 = pneg %p418
          $region70: #{tpu_custom_call.1} parent=67 // pred_check_branch
            %421 = sbr.rel (%p419) target = $region72
          $region71: #{tpu_custom_call.1} parent=67 // pred_region
            %v422 = vld [vmem:[#allocation3] sm:$0x1]
            %v423 = vmul.f32 %v422, 0.125
            %v424 = vld [vmem:[#allocation4] sm:$0x1]
            %v425 = vmul.f32 %v424, 0.125
            %v426 = vmul.f32 %v423, %v423
            %v427 = vsub.f32 %v425, %v426
            %v428 = vmax.f32 %v427, 0.0
            %v429 = vld [vmem:[%s2] sm:$0x1]
            %v430 = vadd.f32 %v428, 1e-05
            %v431 = vrsqrt.pop %v430
            %v432 = vmul.f32 %v429, %v431
            %433 = vst [vmem:[#allocation5] sm:$0x1] %v432
            %v434 = vld [vmem:[%s3] sm:$0x1]
            %v435 = vmul.f32 %v423, %v432
            %v436 = vsub.f32 %v434, %v435
            %437 = vst [vmem:[#allocation6] sm:$0x1] %v436
          $region72: #{tpu_custom_call.1} parent=67 // pred_fallthru
            _
          %s438 = smul.u32 %s29, 8
          %s439 = scalar_lea.vmem [#allocation2], %s438
          %v440 = vld [vmem:[%s439] sm:$0xff]
          %v441 = vld [vmem:[#allocation5] sm:$0x1]
          %v443 = vlaneseq
          %v444 = vshrl.u32 %v443, 7
          %v445 = vsub.s32 0, %v444
          %v446 = vrot.slane %v441, %v445
          %v448 = vmul.f32 %v440, %v446
          %v449 = vld [vmem:[#allocation6] sm:$0x1]
          %v451 = vlaneseq
          %v452 = vshrl.u32 %v451, 7
          %v453 = vsub.s32 0, %v452
          %v454 = vrot.slane %v449, %v453
          %v456 = vadd.f32 %v448, %v454
          %v457 = vmax.f32 %v456, 0.0
          %v458 = vpack.c.bf16 %v457, %v457
          %v459 = vld [vmem:[#allocation12] sm:$0xf]
          %v460 = vld [vmem:[#allocation12 + $0x4] sm:$0xf]
          %v461 = vld [vmem:[#allocation12 + $0x8] sm:$0xf]
          %v462 = vld [vmem:[#allocation12 + $0xc] sm:$0xf]
          %v463 = vld [vmem:[#allocation12 + $0x10] sm:$0xf]
          %v464 = vld [vmem:[#allocation12 + $0x14] sm:$0xf]
          %v465 = vld [vmem:[#allocation12 + $0x18] sm:$0xf]
          %v466 = vld [vmem:[#allocation12 + $0x1c] sm:$0xf]
          %v467 = vld [vmem:[#allocation12 + $0x20] sm:$0xf]
          %v468 = vld [vmem:[#allocation12 + $0x24] sm:$0xf]
          %v469 = vld [vmem:[#allocation12 + $0x28] sm:$0xf]
          %v470 = vld [vmem:[#allocation12 + $0x2c] sm:$0xf]
          %v471 = vld [vmem:[#allocation12 + $0x30] sm:$0xf]
          %v472 = vld [vmem:[#allocation12 + $0x34] sm:$0xf]
          %v473 = vld [vmem:[#allocation12 + $0x38] sm:$0xf]
          %v474 = vld [vmem:[#allocation12 + $0x3c] sm:$0xf]
          %v475 = vld [vmem:[%s5] sm:$0x1]
          %v477 = vlaneseq
          %v478 = vshrl.u32 %v477, 7
          %v479 = vsub.s32 0, %v478
          %v480 = vrot.slane %v475, %v479
          %v498 = vunpack.c.l.b16 %v459
          %v499 = vunpack.c.l.b16 %v460
          %v500 = vunpack.c.l.b16 %v461
          %v501 = vunpack.c.l.b16 %v462
          %v502 = vunpack.c.l.b16 %v463
          %v503 = vunpack.c.l.b16 %v464
          %v504 = vunpack.c.l.b16 %v465
          %v505 = vunpack.c.l.b16 %v466
          %v506 = vunpack.c.l.b16 %v467
          %v507 = vunpack.c.l.b16 %v468
          %v508 = vunpack.c.l.b16 %v469
          %v509 = vunpack.c.l.b16 %v470
          %v510 = vunpack.c.l.b16 %v471
          %v511 = vunpack.c.l.b16 %v472
          %v512 = vunpack.c.l.b16 %v473
          %v513 = vunpack.c.l.b16 %v474
          %v514 = vpack.c.b16 %v499, %v498
          %v515 = vpack.c.b16 %v501, %v500
          %v516 = vpack.c.b16 %v503, %v502
          %v517 = vpack.c.b16 %v505, %v504
          %v518 = vpack.c.b16 %v507, %v506
          %v519 = vpack.c.b16 %v509, %v508
          %v520 = vpack.c.b16 %v511, %v510
          %v521 = vpack.c.b16 %v513, %v512
          %530 = vmatprep.subr.bf16.mxu0 0
          %531 = vmatpush1.bf16.msra.mxu0 %v514
          %532 = vmatprep.subr.bf16.mxu0 0
          %533 = vmatpush1.bf16.msra.mxu0 %v515
          %534 = vmatprep.subr.bf16.mxu0 0
          %535 = vmatpush1.bf16.msra.mxu0 %v516
          %536 = vmatprep.subr.bf16.mxu0 0
          %537 = vmatpush1.bf16.msra.mxu0 %v517
          %538 = vmatprep.subr.bf16.mxu0 0
          %539 = vmatpush1.bf16.msra.mxu0 %v518
          %540 = vmatprep.subr.bf16.mxu0 0
          %541 = vmatpush1.bf16.msra.mxu0 %v519
          %542 = vmatprep.subr.bf16.mxu0 0
          %543 = vmatpush1.bf16.msra.mxu0 %v520
          %544 = vmatprep.subr.bf16.mxu0 0
          %545 = vmatpush1.bf16.msra.mxu0 %v521
          %546 = vmatprep.subr.bf16.mxu0 0
          %547 = vmatpush1.bf16.msra.mxu0 0
          %548 = vmatprep.subr.bf16.mxu0 0
          %549 = vmatpush1.bf16.msra.mxu0 0
          %550 = vmatprep.subr.bf16.mxu0 0
          %551 = vmatpush1.bf16.msra.mxu0 0
          %552 = vmatprep.subr.bf16.mxu0 0
          %553 = vmatpush1.bf16.msra.mxu0 0
          %554 = vmatprep.subr.bf16.mxu0 0
          %555 = vmatpush1.bf16.msra.mxu0 0
          %556 = vmatprep.subr.bf16.mxu0 0
          %557 = vmatpush1.bf16.msra.mxu0 0
          %558 = vmatprep.subr.bf16.mxu0 0
          %559 = vmatpush1.bf16.msra.mxu0 0
          %560 = vmatprep.subr.bf16.mxu0 0
          %561 = vmatpush1.bf16.msra.mxu0 0
          %562 = vmatprep.mubr.bf16.mxu0 0
          %563 = vmatmul.mubr.bf16.gmra.mrb[0].mxu0 %v458
          %v564 = vpop.f32.mrb[0].mxu0
          %v565 = vadd.f32 %v480, %v564
          %v566 = vpop.f32.mrb[0].mxu0
          %v567 = vpop.f32.mrb[0].mxu0
          %v568 = vpop.f32.mrb[0].mxu0
          %569 = vdwg.mxu0
          %570 = vst [vmem:[%s315] sm:$0xff] %v565
        $region68: #{tpu_custom_call.1} parent=43 // pred_fallthru
          _
        %s571 = sand.u32 %s181, 1
        %s572 = scalar_lea.sflag [#allocation9], %s571
        %s573 = sand.u32 %s181, 1
        %s574 = smul.addr %s573, 8
        %s575 = scalar_lea.vmem [#allocation13], %s574
        // Predicated region
        $region73: #{tpu_custom_call.1} parent=43 // pred_check
          %p576 = pneg %p191
        $region74: #{tpu_custom_call.1} parent=43 // pred_check_branch
          %578 = sbr.rel (%p576) target = $region76
        $region75: #{tpu_custom_call.1} parent=43 // pred_region
          %s579 = smul.u32 %s29, %s28
          %s581 = ssub.s32 128, 128
          %582 = vsyncadd %s572, %s581
          %s583 = smul.addr %s579, 128
          %s584 = scalar_lea.hbm %s6, %s583
          %s586 = sshll.u32 %s575, 4
          %s587 = int_to_ptr.vmem [resolvable:$true] %s586
          %589 = dma.vmem_to_hbm [thread:$0]  %s587, 128, %s584, %s572
        $region76: #{tpu_custom_call.1} parent=43 // pred_fallthru
          _
      $region44: #{tpu_custom_call.1} parent=5 // pred_fallthru
        _
      %p590 = scmp.le.s32.totalorder 2, %s19
      // Predicated region
      $region77: #{tpu_custom_call.1} parent=5 // pred_check
        %p591 = pneg %p590
      $region78: #{tpu_custom_call.1} parent=5 // pred_check_branch
        %593 = sbr.rel (%p591) target = $region80
      $region79: #{tpu_custom_call.1} parent=5 // pred_region
        %s594 = ssub.s32 %s19, 2
        // Predicated region
        $region81: #{tpu_custom_call.1} parent=79 // pred_check
          %p595 = pneg %p197
        $region82: #{tpu_custom_call.1} parent=79 // pred_check_branch
          %597 = sbr.rel (%p595) target = $region84
        $region83: #{tpu_custom_call.1} parent=79 // pred_region
          %s598 = sand.u32 %s182, 1
          %s599 = scalar_lea.sflag [#allocation9], %s598
          %s600 = sand.u32 %s182, 1
          %s601 = smul.addr %s600, 8
          %s602 = scalar_lea.vmem [#allocation13], %s601
          %603 = dma.done %s599, 128
        $region84: #{tpu_custom_call.1} parent=79 // pred_fallthru
          _
      $region80: #{tpu_custom_call.1} parent=5 // pred_fallthru
        _
    $region6: #{tpu_custom_call.1} parent=1 // loop_footer
      %s23 = sadd.s32 1, %s19
    $region7: #{tpu_custom_call.1} parent=1 // loop_footer_branch
      %18 = sbr.rel target = $region3
    $region8: #{tpu_custom_call.1} parent=1 // loop_exit
      _
    %604 = vsyncpa [#allocation8], 1
    %s605 = scalar_lea.sflag [#allocation8], 1
    %606 = vsyncpa %s605, 1
    %607 = vsyncpa [#allocation11], 1
    %608 = vsyncpa [#allocation9], 1
    %s609 = scalar_lea.sflag [#allocation9], 1
    %610 = vsyncpa %s609, 1

// kernel: tpu_custom_call.1
$region0: #{tpu_custom_call.1}
  #allocation0 [shape = 'u32[]', space=smem, size = 0x4, offset = 0x4, fixed_abs, tag = 'smem constant byte address 0x4 - core index']
  #allocation1 [shape = 'u32[144,128]{1,0:T(1,128)}', space=vmem, size = 0x12000, scoped, tag = 'internal scratch']
  #allocation2 [shape = 'f32[8,128]{1,0:T(8,128)}', space=vmem, size = 0x1000, scoped, tag = 'scratch operand']
  #allocation3 [shape = 'f32[1,128]{1,0:T(1,128)}', space=vmem, size = 0x200, scoped, tag = 'scratch operand']
  #allocation4 [shape = 'f32[1,128]{1,0:T(1,128)}', space=vmem, size = 0x200, scoped, tag = 'scratch operand']
  #allocation5 [shape = 'f32[1,128]{1,0:T(1,128)}', space=vmem, size = 0x200, scoped, tag = 'scratch operand']
  #allocation6 [shape = 'f32[1,128]{1,0:T(1,128)}', space=vmem, size = 0x200, scoped, tag = 'scratch operand']
  %s0 = inlined_call_operand.hbm [shape: f32[8,32], index: 0, kind: input, shape index: {}]
  %s1 = inlined_call_operand.hbm [shape: bf16[32,128], index: 1, kind: input, shape index: {}]
  %s2 = inlined_call_operand.vmem [shape: f32[1,128], index: 2, kind: input, shape index: {}]
  %s3 = inlined_call_operand.vmem [shape: f32[1,128], index: 3, kind: input, shape index: {}]
  %s4 = inlined_call_operand.hbm [shape: bf16[128,128], index: 4, kind: input, shape index: {}]
  %s5 = inlined_call_operand.vmem [shape: f32[1,128], index: 5, kind: input, shape index: {}]
  %s6 = inlined_call_operand.hbm [shape: f32[8,128], index: 6, kind: output, shape index: {}]
  %s7 = sld [smem:[#allocation0]]
  $region85: #{tpu_custom_call.1} parent=0
    _
  %s9 = ssub.s32 1, %s7
  %s10 = scalar_select 0, %s9, %s7
  $region1: #{tpu_custom_call.1} parent=0
    #allocation7 [shape = 'u8[8192]{0}', space=vmem, size = 0x2000, scoped, tag = 'input window, operand 0']
    #allocation8 [shape = 's32[2]{0}', space=sflag, size = 0x8, scoped, tag = 'scoped memory for tpu_custom_call.1']
    #allocation9 [shape = 's32[2]{0}', space=sflag, size = 0x8, scoped, tag = 'scoped memory for tpu_custom_call.1']
    #allocation10 [shape = 'u8[8192]{0}', space=vmem, size = 0x2000, scoped, tag = 'input window, operand 1, single buffered']
    #allocation11 [shape = 's32[1]{0}', space=sflag, size = 0x4, scoped, tag = 'scoped memory for tpu_custom_call.1']
    #allocation12 [shape = 'u8[32768]{0}', space=vmem, size = 0x8000, scoped, tag = 'input window, operand 4, single buffered']
    #allocation13 [shape = 'u8[8192]{0}', space=vmem, size = 0x2000, scoped, tag = 'output window, operand 0']
    %11 = vsyncpa [#allocation8], 0
    %s12 = scalar_lea.sflag [#allocation8], 1
    %13 = vsyncpa %s12, 0
    %14 = vsyncpa [#allocation11], 0
    %15 = vsyncpa [#allocation9], 0
    %s16 = scalar_lea.sflag [#allocation9], 1
    %17 = vsyncpa %s16, 0
    loop: start=0, step=1, limit=4
    $region2: #{tpu_custom_call.1} parent=1 // loop_pre_header
      _
    $region3: #{tpu_custom_call.1} parent=1 // loop_header
      %s19 = sphi 0, %s23
      %p20 = scmp.ge.s32.totalorder %s19, 4
      %s26 = sphi 0, %s38
      %s27 = sphi 0, %s34
      %s28 = sphi 0, %s26
      %s29 = sphi 0, %s27
      %s30 = sphi 0, %s28
      %s31 = sphi 0, %s29
      %s45 = sphi 0, %s47
      %s48 = sphi 0, %s45
      %s49 = sphi 0, %s48
      %s65 = sphi 0, %s49
      %s69 = sphi 0, %s69
      %s71 = sphi 0, %s69
      %s72 = sphi 0, %s71
      %s86 = sphi 0, %s72
      %s90 = sphi 0, %s90
      %s92 = sphi 0, %s90
      %s93 = sphi 0, %s92
      %s107 = sphi 0, %s93
      %s111 = sphi 0, %s111
      %s113 = sphi 0, %s111
      %s114 = sphi 0, %s113
      %s128 = sphi 0, %s114
      %s132 = sphi 0, %s132
      %s134 = sphi 0, %s132
      %s135 = sphi 0, %s134
      %s149 = sphi 0, %s135
      %s153 = sphi 0, %s153
      %s155 = sphi 0, %s153
      %s156 = sphi 0, %s155
      %s170 = sphi 0, %s156
      %s178 = sphi 0, %s180
      %s181 = sphi 0, %s178
      %s182 = sphi 0, %s181
      %s198 = sphi 0, %s182
    $region4: #{tpu_custom_call.1} parent=1 // loop_header_branch
      %22 = sbr.rel (%p20) target = $region8
    $region5: #{tpu_custom_call.1} parent=1 // loop_body
      %s24 = ssub.s32 %s19, 1
      %s25 = ssub.s32 %s19, 2
      %s32 = sadd.s32 1, %s27
      %p33 = scmp.ge.s32.totalorder %s32, 1
      %s34 = scalar_select %p33, 0, %s32
      %s35 = sadd.s32 1, %s26
      %s36 = scalar_select %p33, %s35, %s26
      %p37 = scmp.ge.s32.totalorder %s36, 2
      %s38 = scalar_select %p37, 0, %s36
      %s39 = ssub.s32 1, %s26
      %s40 = smul.u32 %s27, %s39
      %s41 = ssub.s32 1, %s38
      %s42 = smul.u32 %s34, %s41
      %s43 = ssub.s32 %s40, %s42
      %p44 = scmp.eq.s32.totalorder %s43, 0
      %s46 = sadd.s32 %s45, 1
      %s47 = scalar_select %p44, %s45, %s46
      %p50 = pneg %p44
      %p51 = scmp.eq.s32.totalorder %s19, 1
      %p52 = por %p50, %p51
      %p53 = scmp.ne.s32.totalorder %s45, %s48
      %p54 = scmp.eq.s32.totalorder %s19, 0
      %p55 = por %p53, %p54
      %p56 = scmp.ne.s32.totalorder %s45, %s48
      %p57 = scmp.eq.s32.totalorder %s24, 1
      %p58 = por %p56, %p57
      %p59 = scmp.ne.s32.totalorder %s48, %s49
      %p60 = scmp.eq.s32.totalorder %s24, 0
      %p61 = por %p59, %p60
      %p62 = scmp.ne.s32.totalorder %s48, %s49
      %p63 = scmp.eq.s32.totalorder %s25, 1
      %p64 = por %p62, %p63
      %p66 = scmp.ne.s32.totalorder %s49, %s65
      %p67 = scmp.eq.s32.totalorder %s25, 0
      %p68 = por %p66, %p67
      %s70 = sadd.s32 %s69, 1
      %p73 = scmp.eq.s32.totalorder %s19, 1
      %p74 = scmp.ne.s32.totalorder %s69, %s71
      %p75 = scmp.eq.s32.totalorder %s19, 0
      %p76 = por %p74, %p75
      %p77 = scmp.ne.s32.totalorder %s69, %s71
      %p78 = scmp.eq.s32.totalorder %s24, 1
      %p79 = por %p77, %p78
      %p80 = scmp.ne.s32.totalorder %s71, %s72
      %p81 = scmp.eq.s32.totalorder %s24, 0
      %p82 = por %p80, %p81
      %p83 = scmp.ne.s32.totalorder %s71, %s72
      %p84 = scmp.eq.s32.totalorder %s25, 1
      %p85 = por %p83, %p84
      %p87 = scmp.ne.s32.totalorder %s72, %s86
      %p88 = scmp.eq.s32.totalorder %s25, 0
      %p89 = por %p87, %p88
      %s91 = sadd.s32 %s90, 1
      %p94 = scmp.eq.s32.totalorder %s19, 1
      %p95 = scmp.ne.s32.totalorder %s90, %s92
      %p96 = scmp.eq.s32.totalorder %s19, 0
      %p97 = por %p95, %p96
      %p98 = scmp.ne.s32.totalorder %s90, %s92
      %p99 = scmp.eq.s32.totalorder %s24, 1
      %p100 = por %p98, %p99
      %p101 = scmp.ne.s32.totalorder %s92, %s93
      %p102 = scmp.eq.s32.totalorder %s24, 0
      %p103 = por %p101, %p102
      %p104 = scmp.ne.s32.totalorder %s92, %s93
      %p105 = scmp.eq.s32.totalorder %s25, 1
      %p106 = por %p104, %p105
      %p108 = scmp.ne.s32.totalorder %s93, %s107
      %p109 = scmp.eq.s32.totalorder %s25, 0
      %p110 = por %p108, %p109
      %s112 = sadd.s32 %s111, 1
      %p115 = scmp.eq.s32.totalorder %s19, 1
      %p116 = scmp.ne.s32.totalorder %s111, %s113
      %p117 = scmp.eq.s32.totalorder %s19, 0
      %p118 = por %p116, %p117
      %p119 = scmp.ne.s32.totalorder %s111, %s113
      %p120 = scmp.eq.s32.totalorder %s24, 1
      %p121 = por %p119, %p120
      %p122 = scmp.ne.s32.totalorder %s113, %s114
      %p123 = scmp.eq.s32.totalorder %s24, 0
      %p124 = por %p122, %p123
      %p125 = scmp.ne.s32.totalorder %s113, %s114
      %p126 = scmp.eq.s32.totalorder %s25, 1
      %p127 = por %p125, %p126
      %p129 = scmp.ne.s32.totalorder %s114, %s128
      %p130 = scmp.eq.s32.totalorder %s25, 0
      %p131 = por %p129, %p130
      %s133 = sadd.s32 %s132, 1
      %p136 = scmp.eq.s32.totalorder %s19, 1
      %p137 = scmp.ne.s32.totalorder %s132, %s134
      %p138 = scmp.eq.s32.totalorder %s19, 0
      %p139 = por %p137, %p138
      %p140 = scmp.ne.s32.totalorder %s132, %s134
      %p141 = scmp.eq.s32.totalorder %s24, 1
      %p142 = por %p140, %p141
      %p143 = scmp.ne.s32.totalorder %s134, %s135
      %p144 = scmp.eq.s32.totalorder %s24, 0
      %p145 = por %p143, %p144
      %p146 = scmp.ne.s32.totalorder %s134, %s135
      %p147 = scmp.eq.s32.totalorder %s25, 1
      %p148 = por %p146, %p147
      %p150 = scmp.ne.s32.totalorder %s135, %s149
      %p151 = scmp.eq.s32.totalorder %s25, 0
      %p152 = por %p150, %p151
      %s154 = sadd.s32 %s153, 1
      %p157 = scmp.eq.s32.totalorder %s19, 1
      %p158 = scmp.ne.s32.totalorder %s153, %s155
      %p159 = scmp.eq.s32.totalorder %s19, 0
      %p160 = por %p158, %p159
      %p161 = scmp.ne.s32.totalorder %s153, %s155
      %p162 = scmp.eq.s32.totalorder %s24, 1
      %p163 = por %p161, %p162
      %p164 = scmp.ne.s32.totalorder %s155, %s156
      %p165 = scmp.eq.s32.totalorder %s24, 0
      %p166 = por %p164, %p165
      %p167 = scmp.ne.s32.totalorder %s155, %s156
      %p168 = scmp.eq.s32.totalorder %s25, 1
      %p169 = por %p167, %p168
      %p171 = scmp.ne.s32.totalorder %s156, %s170
      %p172 = scmp.eq.s32.totalorder %s25, 0
      %p173 = por %p171, %p172
      %s174 = smul.u32 %s27, %s26
      %s175 = smul.u32 %s34, %s38
      %s176 = ssub.s32 %s174, %s175
      %p177 = scmp.eq.s32.totalorder %s176, 0
      %s179 = sadd.s32 %s178, 1
      %s180 = scalar_select %p177, %s178, %s179
      %p183 = pneg %p177
      %p184 = scmp.eq.s32.totalorder %s19, 1
      %p185 = por %p183, %p184
      %p186 = scmp.ne.s32.totalorder %s178, %s181
      %p187 = scmp.eq.s32.totalorder %s19, 0
      %p188 = por %p186, %p187
      %p189 = scmp.ne.s32.totalorder %s178, %s181
      %p190 = scmp.eq.s32.totalorder %s24, 1
      %p191 = por %p189, %p190
      %p192 = scmp.ne.s32.totalorder %s181, %s182
      %p193 = scmp.eq.s32.totalorder %s24, 0
      %p194 = por %p192, %p193
      %p195 = scmp.ne.s32.totalorder %s181, %s182
      %p196 = scmp.eq.s32.totalorder %s25, 1
      %p197 = por %p195, %p196
      %p199 = scmp.ne.s32.totalorder %s182, %s198
      %p200 = scmp.eq.s32.totalorder %s25, 0
      %p201 = por %p199, %p200
      %p202 = scmp.le.s32.totalorder 1, %s19
      %p203 = scmp.lt.s32.totalorder %s19, 3
      %p204 = pnand %p202, %p203
      %p205 = pneg %p204
      // Predicated region
      $region9: #{tpu_custom_call.1} parent=5 // pred_check
        _
      $region10: #{tpu_custom_call.1} parent=5 // pred_check_branch
        %207 = sbr.rel (%p204) target = $region12
      $region11: #{tpu_custom_call.1} parent=5 // pred_region
        %s208 = ssub.s32 %s19, 1
        // Predicated region
        $region13: #{tpu_custom_call.1} parent=11 // pred_check
          %p209 = pneg %p82
        $region14: #{tpu_custom_call.1} parent=11 // pred_check_branch
          %211 = sbr.rel (%p209) target = $region16
        $region15: #{tpu_custom_call.1} parent=11 // pred_region
          %s213 = ssub.s32 256, 256
          %214 = vsyncadd [#allocation11], %s213
          %s215 = sshll.u32 [#allocation10], 4
          %s216 = int_to_ptr.vmem [resolvable:$true] %s215
          %221 = dma.hbm_to_vmem [thread:$0]  %s1, 256, %s216, [#allocation11], 64, 64, 4
        $region16: #{tpu_custom_call.1} parent=11 // pred_fallthru
          _
        // Predicated region
        $region17: #{tpu_custom_call.1} parent=11 // pred_check
          %p222 = pneg %p103
        $region18: #{tpu_custom_call.1} parent=11 // pred_check_branch
          %224 = sbr.rel (%p222) target = $region20
        $region19: #{tpu_custom_call.1} parent=11 // pred_region
          _
        $region20: #{tpu_custom_call.1} parent=11 // pred_fallthru
          _
        // Predicated region
        $region21: #{tpu_custom_call.1} parent=11 // pred_check
          %p225 = pneg %p124
        $region22: #{tpu_custom_call.1} parent=11 // pred_check_branch
          %227 = sbr.rel (%p225) target = $region24
        $region23: #{tpu_custom_call.1} parent=11 // pred_region
          _
        $region24: #{tpu_custom_call.1} parent=11 // pred_fallthru
          _
        // Predicated region
        $region25: #{tpu_custom_call.1} parent=11 // pred_check
          %p228 = pneg %p145
        $region26: #{tpu_custom_call.1} parent=11 // pred_check_branch
          %230 = sbr.rel (%p228) target = $region28
        $region27: #{tpu_custom_call.1} parent=11 // pred_region
          %s232 = ssub.s32 1024, 1024
          %233 = vsyncadd [#allocation11], %s232
          %s234 = sshll.u32 [#allocation12], 4
          %s235 = int_to_ptr.vmem [resolvable:$true] %s234
          %240 = dma.hbm_to_vmem [thread:$0]  %s4, 1024, %s235, [#allocation11], 64, 64, 4
        $region28: #{tpu_custom_call.1} parent=11 // pred_fallthru
          _
        // Predicated region
        $region29: #{tpu_custom_call.1} parent=11 // pred_check
          %p241 = pneg %p166
        $region30: #{tpu_custom_call.1} parent=11 // pred_check_branch
          %243 = sbr.rel (%p241) target = $region32
        $region31: #{tpu_custom_call.1} parent=11 // pred_region
          _
        $region32: #{tpu_custom_call.1} parent=11 // pred_fallthru
          _
      $region12: #{tpu_custom_call.1} parent=5 // pred_fallthru
        _
      %p244 = scmp.lt.s32.totalorder %s19, 2
      // Predicated region
      $region33: #{tpu_custom_call.1} parent=5 // pred_check
        %p245 = pneg %p244
      $region34: #{tpu_custom_call.1} parent=5 // pred_check_branch
        %247 = sbr.rel (%p245) target = $region36
      $region35: #{tpu_custom_call.1} parent=5 // pred_region
        // Predicated region
        $region37: #{tpu_custom_call.1} parent=35 // pred_check
          %p248 = pneg %p55
        $region38: #{tpu_custom_call.1} parent=35 // pred_check_branch
          %250 = sbr.rel (%p248) target = $region40
        $region39: #{tpu_custom_call.1} parent=35 // pred_region
          %s251 = sand.u32 %s45, 1
          %s252 = scalar_lea.sflag [#allocation8], %s251
          %s253 = sand.u32 %s45, 1
          %s254 = smul.addr %s253, 8
          %s255 = scalar_lea.vmem [#allocation7], %s254
          %s256 = ssub.s32 1, %s26
          %s257 = smul.u32 %s27, %s256
          %s259 = ssub.s32 128, 128
          %260 = vsyncadd %s252, %s259
          %s261 = smul.addr %s257, 128
          %s262 = scalar_lea.hbm %s0, %s261
          %s264 = sshll.u32 %s255, 4
          %s265 = int_to_ptr.vmem [resolvable:$true] %s264
          %267 = dma.hbm_to_vmem [thread:$0]  %s262, 128, %s265, %s252
        $region40: #{tpu_custom_call.1} parent=35 // pred_fallthru
          _
      $region36: #{tpu_custom_call.1} parent=5 // pred_fallthru
        _
      %p268 = scmp.le.s32.totalorder 1, %s19
      %p269 = scmp.lt.s32.totalorder %s19, 3
      %p270 = pnand %p268, %p269
      %p271 = pneg %p270
      // Predicated region
      $region41: #{tpu_custom_call.1} parent=5 // pred_check
        _
      $region42: #{tpu_custom_call.1} parent=5 // pred_check_branch
        %273 = sbr.rel (%p270) target = $region44
      $region43: #{tpu_custom_call.1} parent=5 // pred_region
        %s274 = ssub.s32 %s19, 1
        %s275 = sand.u32 %s48, 1
        %s276 = scalar_lea.sflag [#allocation8], %s275
        %s277 = sand.u32 %s48, 1
        %s278 = smul.addr %s277, 8
        %s279 = scalar_lea.vmem [#allocation7], %s278
        // Predicated region
        $region45: #{tpu_custom_call.1} parent=43 // pred_check
          %p280 = pneg %p61
        $region46: #{tpu_custom_call.1} parent=43 // pred_check_branch
          %282 = sbr.rel (%p280) target = $region48
        $region47: #{tpu_custom_call.1} parent=43 // pred_region
          %283 = dma.done %s276, 128
        $region48: #{tpu_custom_call.1} parent=43 // pred_fallthru
          _
        // Predicated region
        $region49: #{tpu_custom_call.1} parent=43 // pred_check
          %p284 = pneg %p82
        $region50: #{tpu_custom_call.1} parent=43 // pred_check_branch
          %286 = sbr.rel (%p284) target = $region52
        $region51: #{tpu_custom_call.1} parent=43 // pred_region
          %287 = dma.done [#allocation11], 256
        $region52: #{tpu_custom_call.1} parent=43 // pred_fallthru
          _
        // Predicated region
        $region53: #{tpu_custom_call.1} parent=43 // pred_check
          %p288 = pneg %p145
        $region54: #{tpu_custom_call.1} parent=43 // pred_check_branch
          %290 = sbr.rel (%p288) target = $region56
        $region55: #{tpu_custom_call.1} parent=43 // pred_region
          %291 = dma.done [#allocation11], 1024
        $region56: #{tpu_custom_call.1} parent=43 // pred_fallthru
          _
        %s292 = sand.u32 %s48, 1
        %s293 = scalar_lea.sflag [#allocation8], %s292
        %s294 = sand.u32 %s48, 1
        %s295 = smul.addr %s294, 8
        %s296 = scalar_lea.vmem [#allocation7], %s295
        %p297 = pneg %p61
        %p298 = pneg %p58
        %p299 = pneg %p82
        %p300 = pneg %p79
        %p301 = pneg %p103
        %p302 = pneg %p100
        %p303 = pneg %p124
        %p304 = pneg %p121
        %p305 = pneg %p145
        %p306 = pneg %p142
        %p307 = pneg %p166
        %p308 = pneg %p163
        %p309 = pneg %p194
        %p310 = pneg %p191
        %s311 = sand.u32 %s181, 1
        %s312 = scalar_lea.sflag [#allocation9], %s311
        %s313 = sand.u32 %s181, 1
        %s314 = smul.addr %s313, 8
        %s315 = scalar_lea.vmem [#allocation13], %s314
        %s316 = ssub.s32 1, %s28
        %s317 = smul.u32 %s29, %s316
        %s318 = smul.u32 %s29, %s28
        %p320 = scmp.eq.s32.totalorder %s28, 0
        // Predicated region
        $region57: #{tpu_custom_call.1} parent=43 // pred_check
          %p321 = pneg %p320
        $region58: #{tpu_custom_call.1} parent=43 // pred_check_branch
          %323 = sbr.rel (%p321) target = $region60
        $region59: #{tpu_custom_call.1} parent=43 // pred_region
          %p324 = scmp.eq.s32.totalorder %s29, 0
          // Predicated region
          $region61: #{tpu_custom_call.1} parent=59 // pred_check
            %p325 = pneg %p324
          $region62: #{tpu_custom_call.1} parent=59 // pred_check_branch
            %327 = sbr.rel (%p325) target = $region64
          $region63: #{tpu_custom_call.1} parent=59 // pred_region
            %328 = vst [vmem:[#allocation3] sm:$0x1] 0.0
            %329 = vst [vmem:[#allocation4] sm:$0x1] 0.0
          $region64: #{tpu_custom_call.1} parent=59 // pred_fallthru
            _
          %v330 = vld [vmem:[%s279] sm:$0xff]
          %v331 = vpack.c.bf16 %v330, %v330
          %v332 = vld [vmem:[#allocation10] sm:$0xf]
          %v333 = vld [vmem:[#allocation10 + $0x4] sm:$0xf]
          %v334 = vld [vmem:[#allocation10 + $0x8] sm:$0xf]
          %v335 = vld [vmem:[#allocation10 + $0xc] sm:$0xf]
          %v340 = vunpack.c.l.b16 %v332
          %v341 = vunpack.c.l.b16 %v333
          %v342 = vunpack.c.l.b16 %v334
          %v343 = vunpack.c.l.b16 %v335
          %v344 = vpack.c.b16 %v341, %v340
          %v345 = vpack.c.b16 %v343, %v342
          %vm348 = vcmask 261120
          %v350 = vsel %vm348, %v331, 0
          %352 = vmatprep.subr.bf16.mxu0 0
          %353 = vmatpush1.bf16.msra.mxu0 %v344
          %354 = vmatprep.subr.bf16.mxu0 0
          %355 = vmatpush1.bf16.msra.mxu0 %v345
          %356 = vmatprep.subr.bf16.mxu0 0
          %357 = vmatpush1.bf16.msra.mxu0 0
          %358 = vmatprep.subr.bf16.mxu0 0
          %359 = vmatpush1.bf16.msra.mxu0 0
          %360 = vmatprep.subr.bf16.mxu0 0
          %361 = vmatpush1.bf16.msra.mxu0 0
          %362 = vmatprep.subr.bf16.mxu0 0
          %363 = vmatpush1.bf16.msra.mxu0 0
          %364 = vmatprep.subr.bf16.mxu0 0
          %365 = vmatpush1.bf16.msra.mxu0 0
          %366 = vmatprep.subr.bf16.mxu0 0
          %367 = vmatpush1.bf16.msra.mxu0 0
          %368 = vmatprep.subr.bf16.mxu0 0
          %369 = vmatpush1.bf16.msra.mxu0 0
          %370 = vmatprep.subr.bf16.mxu0 0
          %371 = vmatpush1.bf16.msra.mxu0 0
          %372 = vmatprep.subr.bf16.mxu0 0
          %373 = vmatpush1.bf16.msra.mxu0 0
          %374 = vmatprep.subr.bf16.mxu0 0
          %375 = vmatpush1.bf16.msra.mxu0 0
          %376 = vmatprep.subr.bf16.mxu0 0
          %377 = vmatpush1.bf16.msra.mxu0 0
          %378 = vmatprep.subr.bf16.mxu0 0
          %379 = vmatpush1.bf16.msra.mxu0 0
          %380 = vmatprep.subr.bf16.mxu0 0
          %381 = vmatpush1.bf16.msra.mxu0 0
          %382 = vmatprep.subr.bf16.mxu0 0
          %383 = vmatpush1.bf16.msra.mxu0 0
          %384 = vmatprep.mubr.bf16.mxu0 0
          %385 = vmatmul.mubr.bf16.gmra.mrb[0].mxu0 %v350
          %v386 = vpop.f32.mrb[0].mxu0
          %v387 = vadd.f32 0.0, %v386
          %v388 = vpop.f32.mrb[0].mxu0
          %v389 = vpop.f32.mrb[0].mxu0
          %v390 = vpop.f32.mrb[0].mxu0
          %391 = vdwg.mxu0
          %s392 = smul.u32 %s29, 8
          %s393 = scalar_lea.vmem [#allocation2], %s392
          %394 = vst [vmem:[%s393] sm:$0xff] %v387
          %v395 = vld [vmem:[#allocation3] sm:$0x1]
          %v396 = vrot.slane %v387, 4
          %v397 = vadd.f32 %v387, %v396
          %v398 = vrot.slane %v397, 2
          %v399 = vadd.f32 %v397, %v398
          %v400 = vrot.slane %v399, 1
          %v401 = vadd.f32 %v399, %v400
          %v402 = vadd.f32 %v395, %v401
          %403 = vst [vmem:[#allocation3] sm:$0x1] %v402
          %v404 = vld [vmem:[#allocation4] sm:$0x1]
          %v405 = vmul.f32 %v387, %v387
          %v406 = vrot.slane %v405, 4
          %v407 = vadd.f32 %v405, %v406
          %v408 = vrot.slane %v407, 2
          %v409 = vadd.f32 %v407, %v408
          %v410 = vrot.slane %v409, 1
          %v411 = vadd.f32 %v409, %v410
          %v412 = vadd.f32 %v404, %v411
          %413 = vst [vmem:[#allocation4] sm:$0x1] %v412
        $region60: #{tpu_custom_call.1} parent=43 // pred_fallthru
          _
        %p414 = scmp.eq.s32.totalorder %s28, 1
        // Predicated region
        $region65: #{tpu_custom_call.1} parent=43 // pred_check
          %p415 = pneg %p414
        $region66: #{tpu_custom_call.1} parent=43 // pred_check_branch
          %417 = sbr.rel (%p415) target = $region68
        $region67: #{tpu_custom_call.1} parent=43 // pred_region
          %p418 = scmp.eq.s32.totalorder %s29, 0
          // Predicated region
          $region69: #{tpu_custom_call.1} parent=67 // pred_check
            %p419 = pneg %p418
          $region70: #{tpu_custom_call.1} parent=67 // pred_check_branch
            %421 = sbr.rel (%p419) target = $region72
          $region71: #{tpu_custom_call.1} parent=67 // pred_region
            %v422 = vld [vmem:[#allocation3] sm:$0x1]
            %v423 = vmul.f32 %v422, 0.125
            %v424 = vld [vmem:[#allocation4] sm:$0x1]
            %v425 = vmul.f32 %v424, 0.125
            %v426 = vmul.f32 %v423, %v423
            %v427 = vsub.f32 %v425, %v426
            %v428 = vmax.f32 %v427, 0.0
            %v429 = vld [vmem:[%s2] sm:$0x1]
            %v430 = vadd.f32 %v428, 1e-05
            %v431 = vrsqrt.pop %v430
            %v432 = vmul.f32 %v429, %v431
            %433 = vst [vmem:[#allocation5] sm:$0x1] %v432
            %v434 = vld [vmem:[%s3] sm:$0x1]
            %v435 = vmul.f32 %v423, %v432
            %v436 = vsub.f32 %v434, %v435
            %437 = vst [vmem:[#allocation6] sm:$0x1] %v436
          $region72: #{tpu_custom_call.1} parent=67 // pred_fallthru
            _
          %s438 = smul.u32 %s29, 8
          %s439 = scalar_lea.vmem [#allocation2], %s438
          %v440 = vld [vmem:[%s439] sm:$0xff]
          %v441 = vld [vmem:[#allocation5] sm:$0x1]
          %v443 = vlaneseq
          %v444 = vshrl.u32 %v443, 7
          %v445 = vsub.s32 0, %v444
          %v446 = vrot.slane %v441, %v445
          %v448 = vmul.f32 %v440, %v446
          %v449 = vld [vmem:[#allocation6] sm:$0x1]
          %v451 = vlaneseq
          %v452 = vshrl.u32 %v451, 7
          %v453 = vsub.s32 0, %v452
          %v454 = vrot.slane %v449, %v453
          %v456 = vadd.f32 %v448, %v454
          %v457 = vmax.f32 %v456, 0.0
          %v458 = vpack.c.bf16 %v457, %v457
          %v459 = vld [vmem:[#allocation12] sm:$0xf]
          %v460 = vld [vmem:[#allocation12 + $0x4] sm:$0xf]
          %v461 = vld [vmem:[#allocation12 + $0x8] sm:$0xf]
          %v462 = vld [vmem:[#allocation12 + $0xc] sm:$0xf]
          %v463 = vld [vmem:[#allocation12 + $0x10] sm:$0xf]
          %v464 = vld [vmem:[#allocation12 + $0x14] sm:$0xf]
          %v465 = vld [vmem:[#allocation12 + $0x18] sm:$0xf]
          %v466 = vld [vmem:[#allocation12 + $0x1c] sm:$0xf]
          %v467 = vld [vmem:[#allocation12 + $0x20] sm:$0xf]
          %v468 = vld [vmem:[#allocation12 + $0x24] sm:$0xf]
          %v469 = vld [vmem:[#allocation12 + $0x28] sm:$0xf]
          %v470 = vld [vmem:[#allocation12 + $0x2c] sm:$0xf]
          %v471 = vld [vmem:[#allocation12 + $0x30] sm:$0xf]
          %v472 = vld [vmem:[#allocation12 + $0x34] sm:$0xf]
          %v473 = vld [vmem:[#allocation12 + $0x38] sm:$0xf]
          %v474 = vld [vmem:[#allocation12 + $0x3c] sm:$0xf]
          %v475 = vld [vmem:[%s5] sm:$0x1]
          %v477 = vlaneseq
          %v478 = vshrl.u32 %v477, 7
          %v479 = vsub.s32 0, %v478
          %v480 = vrot.slane %v475, %v479
          %v498 = vunpack.c.l.b16 %v459
          %v499 = vunpack.c.l.b16 %v460
          %v500 = vunpack.c.l.b16 %v461
          %v501 = vunpack.c.l.b16 %v462
          %v502 = vunpack.c.l.b16 %v463
          %v503 = vunpack.c.l.b16 %v464
          %v504 = vunpack.c.l.b16 %v465
          %v505 = vunpack.c.l.b16 %v466
          %v506 = vunpack.c.l.b16 %v467
          %v507 = vunpack.c.l.b16 %v468
          %v508 = vunpack.c.l.b16 %v469
          %v509 = vunpack.c.l.b16 %v470
          %v510 = vunpack.c.l.b16 %v471
          %v511 = vunpack.c.l.b16 %v472
          %v512 = vunpack.c.l.b16 %v473
          %v513 = vunpack.c.l.b16 %v474
          %v514 = vpack.c.b16 %v499, %v498
          %v515 = vpack.c.b16 %v501, %v500
          %v516 = vpack.c.b16 %v503, %v502
          %v517 = vpack.c.b16 %v505, %v504
          %v518 = vpack.c.b16 %v507, %v506
          %v519 = vpack.c.b16 %v509, %v508
          %v520 = vpack.c.b16 %v511, %v510
          %v521 = vpack.c.b16 %v513, %v512
          %530 = vmatprep.subr.bf16.mxu0 0
          %531 = vmatpush1.bf16.msra.mxu0 %v514
          %532 = vmatprep.subr.bf16.mxu0 0
          %533 = vmatpush1.bf16.msra.mxu0 %v515
          %534 = vmatprep.subr.bf16.mxu0 0
          %535 = vmatpush1.bf16.msra.mxu0 %v516
          %536 = vmatprep.subr.bf16.mxu0 0
          %537 = vmatpush1.bf16.msra.mxu0 %v517
          %538 = vmatprep.subr.bf16.mxu0 0
          %539 = vmatpush1.bf16.msra.mxu0 %v518
          %540 = vmatprep.subr.bf16.mxu0 0
          %541 = vmatpush1.bf16.msra.mxu0 %v519
          %542 = vmatprep.subr.bf16.mxu0 0
          %543 = vmatpush1.bf16.msra.mxu0 %v520
          %544 = vmatprep.subr.bf16.mxu0 0
          %545 = vmatpush1.bf16.msra.mxu0 %v521
          %546 = vmatprep.subr.bf16.mxu0 0
          %547 = vmatpush1.bf16.msra.mxu0 0
          %548 = vmatprep.subr.bf16.mxu0 0
          %549 = vmatpush1.bf16.msra.mxu0 0
          %550 = vmatprep.subr.bf16.mxu0 0
          %551 = vmatpush1.bf16.msra.mxu0 0
          %552 = vmatprep.subr.bf16.mxu0 0
          %553 = vmatpush1.bf16.msra.mxu0 0
          %554 = vmatprep.subr.bf16.mxu0 0
          %555 = vmatpush1.bf16.msra.mxu0 0
          %556 = vmatprep.subr.bf16.mxu0 0
          %557 = vmatpush1.bf16.msra.mxu0 0
          %558 = vmatprep.subr.bf16.mxu0 0
          %559 = vmatpush1.bf16.msra.mxu0 0
          %560 = vmatprep.subr.bf16.mxu0 0
          %561 = vmatpush1.bf16.msra.mxu0 0
          %562 = vmatprep.mubr.bf16.mxu0 0
          %563 = vmatmul.mubr.bf16.gmra.mrb[0].mxu0 %v458
          %v564 = vpop.f32.mrb[0].mxu0
          %v565 = vadd.f32 %v480, %v564
          %v566 = vpop.f32.mrb[0].mxu0
          %v567 = vpop.f32.mrb[0].mxu0
          %v568 = vpop.f32.mrb[0].mxu0
          %569 = vdwg.mxu0
          %570 = vst [vmem:[%s315] sm:$0xff] %v565
        $region68: #{tpu_custom_call.1} parent=43 // pred_fallthru
          _
        %s571 = sand.u32 %s181, 1
        %s572 = scalar_lea.sflag [#allocation9], %s571
        %s573 = sand.u32 %s181, 1
        %s574 = smul.addr %s573, 8
        %s575 = scalar_lea.vmem [#allocation13], %s574
        // Predicated region
        $region73: #{tpu_custom_call.1} parent=43 // pred_check
          %p576 = pneg %p191
        $region74: #{tpu_custom_call.1} parent=43 // pred_check_branch
          %578 = sbr.rel (%p576) target = $region76
        $region75: #{tpu_custom_call.1} parent=43 // pred_region
          %s579 = smul.u32 %s29, %s28
          %s581 = ssub.s32 128, 128
          %582 = vsyncadd %s572, %s581
          %s583 = smul.addr %s579, 128
          %s584 = scalar_lea.hbm %s6, %s583
          %s586 = sshll.u32 %s575, 4
          %s587 = int_to_ptr.vmem [resolvable:$true] %s586
          %589 = dma.vmem_to_hbm [thread:$0]  %s587, 128, %s584, %s572
        $region76: #{tpu_custom_call.1} parent=43 // pred_fallthru
          _
      $region44: #{tpu_custom_call.1} parent=5 // pred_fallthru
        _
      %p590 = scmp.le.s32.totalorder 2, %s19
      // Predicated region
      $region77: #{tpu_custom_call.1} parent=5 // pred_check
        %p591 = pneg %p590
      $region78: #{tpu_custom_call.1} parent=5 // pred_check_branch
        %593 = sbr.rel (%p591) target = $region80
      $region79: #{tpu_custom_call.1} parent=5 // pred_region
        %s594 = ssub.s32 %s19, 2
        // Predicated region
        $region81: #{tpu_custom_call.1} parent=79 // pred_check
          %p595 = pneg %p197
        $region82: #{tpu_custom_call.1} parent=79 // pred_check_branch
          %597 = sbr.rel (%p595) target = $region84
        $region83: #{tpu_custom_call.1} parent=79 // pred_region
          %s598 = sand.u32 %s182, 1
          %s599 = scalar_lea.sflag [#allocation9], %s598
          %s600 = sand.u32 %s182, 1
          %s601 = smul.addr %s600, 8
          %s602 = scalar_lea.vmem [#allocation13], %s601
          %603 = dma.done %s599, 128
        $region84: #{tpu_custom_call.1} parent=79 // pred_fallthru
          _
      $region80: #{tpu_custom_call.1} parent=5 // pred_fallthru
        _
    $region6: #{tpu_custom_call.1} parent=1 // loop_footer
      %s23 = sadd.s32 1, %s19
    $region7: #{tpu_custom_call.1} parent=1 // loop_footer_branch
      %18 = sbr.rel target = $region3
    $region8: #{tpu_custom_call.1} parent=1 // loop_exit
      _
    %604 = vsyncpa [#allocation8], 1
    %s605 = scalar_lea.sflag [#allocation8], 1
    %606 = vsyncpa %s605, 1
    %607 = vsyncpa [#allocation11], 1
    %608 = vsyncpa [#allocation9], 1
    %s609 = scalar_lea.sflag [#allocation9], 1
    %610 = vsyncpa %s609, 1

</llo_original>
